<compile_context>
chip_gen: v6e
topology: v6e:2x2x1
jax: 0.10.0
libtpu: 0.0.40
codegen_flags: <defaults>
</compile_context>

<pallas_src>
import jax
import jax.numpy as jnp
from jax.experimental import pallas as pl
from jax.experimental.pallas import tpu as pltpu

FEAT_DIM = 32
D_IN = 768
D_H1 = 512
D_H2 = 256
D_MU_X = 512 - 3 * FEAT_DIM           # 416
D_HEAD = D_MU_X + 3 * FEAT_DIM        # 512 (= total mu width = total logvar width)
D_HEADS_OUT = 2 * D_HEAD              # 1024 (mu | logvar fused)
NEG_SLOPE = 0.01                      # nn.LeakyReLU() default


def _leaky_relu(x):
    # max(x, 0.01*x) == LeakyReLU(x) for slope in (0, 1); cheaper than where().
    return jnp.maximum(x, NEG_SLOPE * x)


def text_encoder_kernel(x_ref, w1_ref, b1_ref, w2_ref, b2_ref,
                        wh_ref, bh_ref, eps_ref,
                        z_ref, mu_ref, lv_ref):
    x = x_ref[...]

    # fc1 + LeakyReLU  (bf16 operands, f32 accumulate, f32 elementwise)
    h = jnp.dot(x.astype(jnp.bfloat16), w1_ref[...],
                preferred_element_type=jnp.float32) + b1_ref[...]
    h = _leaky_relu(h)

    # fc2 + LeakyReLU
    h = jnp.dot(h.astype(jnp.bfloat16), w2_ref[...],
                preferred_element_type=jnp.float32) + b2_ref[...]
    h = _leaky_relu(h)

    # fused projection heads: [mu_x|mu_y|mu_r|mu_s | lv_x|lv_y|lv_r|lv_s]
    heads = jnp.dot(h.astype(jnp.bfloat16), wh_ref[...],
                    preferred_element_type=jnp.float32) + bh_ref[...]
    mu = heads[:, :D_HEAD]
    lv = heads[:, D_HEAD:]

    # reparameterize: z = eps * exp(0.5 * logvar) + mu
    std = jnp.exp(0.5 * lv)
    z_ref[...] = eps_ref[...] * std + mu
    mu_ref[...] = mu
    lv_ref[...] = lv


def _pick_tm(batch):
    """Batch tile: biggest nicely-dividing tile, else one block (small/ragged B)."""
    for tm in (256, 128):
        if batch % tm == 0:
            return tm
    return batch


def text_encoder_forward(x, params, eps):
    """x: (B, 768) f32, eps: (B, 512) f32.
    Returns ((z_x,z_y,z_r,z_s), (mu_...), (logvar_...)) matching the PyTorch module."""
    B = x.shape[0]
    dt = jnp.float32
    tm = _pick_tm(B)
    grid = (B // tm,)

    flops = 2 * B * (D_IN * D_H1 + D_H1 * D_H2 + D_H2 * D_HEADS_OUT)
    transcendentals = B * D_HEAD
    bytes_accessed = (
        (D_IN * D_H1 + D_H1 * D_H2 + D_H2 * D_HEADS_OUT) * 2   # bf16 weights
        + (D_H1 + D_H2 + D_HEADS_OUT) * 4                       # f32 biases
        + B * (D_IN + D_HEAD) * 4                               # x + eps in
        + B * 3 * D_HEAD * 4                                    # z, mu, lv out
    )

    z, mu, lv = pl.pallas_call(
        text_encoder_kernel,
        out_shape=(
            jax.ShapeDtypeStruct((B, D_HEAD), dt),
            jax.ShapeDtypeStruct((B, D_HEAD), dt),
            jax.ShapeDtypeStruct((B, D_HEAD), dt),
        ),
        grid=grid,
        in_specs=[
            pl.BlockSpec((tm, D_IN), lambda i: (i, 0)),          # x (streamed)
            pl.BlockSpec((D_IN, D_H1), lambda i: (0, 0)),        # w1 (resident)
            pl.BlockSpec((1, D_H1), lambda i: (0, 0)),           # b1
            pl.BlockSpec((D_H1, D_H2), lambda i: (0, 0)),        # w2
            pl.BlockSpec((1, D_H2), lambda i: (0, 0)),           # b2
            pl.BlockSpec((D_H2, D_HEADS_OUT), lambda i: (0, 0)), # fused head weight
            pl.BlockSpec((1, D_HEADS_OUT), lambda i: (0, 0)),    # fused head bias
            pl.BlockSpec((tm, D_HEAD), lambda i: (i, 0)),        # eps (streamed)
        ],
        out_specs=(
            pl.BlockSpec((tm, D_HEAD), lambda i: (i, 0)),
            pl.BlockSpec((tm, D_HEAD), lambda i: (i, 0)),
            pl.BlockSpec((tm, D_HEAD), lambda i: (i, 0)),
        ),
        compiler_params=pltpu.CompilerParams(
            dimension_semantics=("parallel",)),
        cost_estimate=pl.CostEstimate(
            flops=flops, transcendentals=transcendentals,
            bytes_accessed=bytes_accessed),
    )(
        x,
        params["w1"], params["b1"],
        params["w2"], params["b2"],
        params["w_heads"], params["b_heads"],
        eps,
    )

    def split4(t):
        return (t[:, :D_MU_X],
                t[:, D_MU_X:D_MU_X + FEAT_DIM],
                t[:, D_MU_X + FEAT_DIM:D_MU_X + 2 * FEAT_DIM],
                t[:, D_MU_X + 2 * FEAT_DIM:])

    return split4(z), split4(mu), split4(lv)


def init_params(key):
    """Deterministic synthetic init. Weights created in PyTorch (out, in) layout,
    then transposed / fused into the kernel's (in, out) bf16 fused layout."""
    ks = jax.random.split(key, 12)

    def lin(kw, kb, out_f, in_f, scale):
        w = jax.random.normal(kw, (out_f, in_f), jnp.float32) * scale
        b = jax.random.normal(kb, (out_f,), jnp.float32) * scale
        return w, b

    w_fc1, b_fc1 = lin(ks[0], ks[1], D_H1, D_IN, 0.02)
    w_fc2, b_fc2 = lin(ks[2], ks[3], D_H2, D_H1, 0.02)
    w_px, b_px = lin(ks[4], ks[5], 2 * D_MU_X, D_H2, 0.02)       # proj_x: 256 -> 832
    w_py, b_py = lin(ks[6], ks[7], 2 * FEAT_DIM, D_H2, 0.02)     # proj_y: 256 -> 64
    w_pr, b_pr = lin(ks[8], ks[9], 2 * FEAT_DIM, D_H2, 0.02)     # proj_r: 256 -> 64
    w_ps, b_ps = lin(ks[10], ks[11], 2 * FEAT_DIM, D_H2, 0.02)   # proj_s: 256 -> 64

    # chunk(2, dim=-1): first half of each projection output is mu, second is logvar.
    # Fuse all mu parts then all logvar parts into ONE (256, 1024) head weight.
    w_heads = jnp.concatenate(
        [w_px[:D_MU_X], w_py[:FEAT_DIM], w_pr[:FEAT_DIM], w_ps[:FEAT_DIM],
         w_px[D_MU_X:], w_py[FEAT_DIM:], w_pr[FEAT_DIM:], w_ps[FEAT_DIM:]], axis=0)
    b_heads = jnp.concatenate(
        [b_px[:D_MU_X], b_py[:FEAT_DIM], b_pr[:FEAT_DIM], b_ps[:FEAT_DIM],
         b_px[D_MU_X:], b_py[FEAT_DIM:], b_pr[FEAT_DIM:], b_ps[FEAT_DIM:]], axis=0)

    bf16 = jnp.bfloat16
    return {
        "w1": w_fc1.T.astype(bf16), "b1": b_fc1.reshape(1, D_H1),
        "w2": w_fc2.T.astype(bf16), "b2": b_fc2.reshape(1, D_H2),
        "w_heads": w_heads.T.astype(bf16), "b_heads": b_heads.reshape(1, D_HEADS_OUT),
    }


def reference_forward(x, params, eps):
    """Plain-JAX reference mirroring the PyTorch forward (same bf16-weight /
    f32-accumulate numerics as the kernel) for the correctness check."""
    f32 = jnp.float32
    h = _leaky_relu(jnp.dot(x.astype(jnp.bfloat16), params["w1"],
                            preferred_element_type=f32) + params["b1"])
    h = _leaky_relu(jnp.dot(h.astype(jnp.bfloat16), params["w2"],
                            preferred_element_type=f32) + params["b2"])
    heads = jnp.dot(h.astype(jnp.bfloat16), params["w_heads"],
                    preferred_element_type=f32) + params["b_heads"]
    mu = heads[:, :D_HEAD]
    lv = heads[:, D_HEAD:]
    z = eps * jnp.exp(0.5 * lv) + mu
    return z, mu, lv


if __name__ == "__main__":
    key = jax.random.PRNGKey(0)
    k_param, k_x, k_eps = jax.random.split(key, 3)

    B = 8
    x = jax.random.normal(k_x, (B, D_IN), jnp.float32)
    # TODO(synk): PyTorch draws eps with torch.cuda RNG inside forward; here eps is
    # drawn deterministically in the wrapper and streamed in so the kernel is testable.
    eps = jax.random.normal(k_eps, (B, D_HEAD), jnp.float32)
    params = init_params(k_param)

    fwd = jax.jit(text_encoder_forward)
    (zs, mus, lvs) = fwd(x, params, eps)
    jax.block_until_ready(zs)
    jax.block_until_ready(mus)
    jax.block_until_ready(lvs)

    # sanity check vs. plain-JAX reference
    z_ref, mu_ref, lv_ref = reference_forward(x, params, eps)
    z_all = jnp.concatenate(zs, axis=-1)
    mu_all = jnp.concatenate(mus, axis=-1)
    lv_all = jnp.concatenate(lvs, axis=-1)
    assert jnp.allclose(z_all, z_ref, atol=1e-3, rtol=1e-3)
    assert jnp.allclose(mu_all, mu_ref, atol=1e-3, rtol=1e-3)
    assert jnp.allclose(lv_all, lv_ref, atol=1e-3, rtol=1e-3)

    # expected split shapes: (B,416), (B,32), (B,32), (B,32)
    assert zs[0].shape == (B, 416) and zs[1].shape == (B, 32)
    assert zs[2].shape == (B, 32) and zs[3].shape == (B, 32)

    print("KERNEL_OK")
</pallas_src>

<mosaic_0001>
module attributes {stable_mosaic.version = 11 : i64} {
  func.func @text_encoder_kernel(%arg0: i32, %arg1: memref<8x768xf32, #tpu.memory_space<vmem>>, %arg2: memref<768x512xbf16, #tpu.memory_space<vmem>>, %arg3: memref<1x512xf32, #tpu.memory_space<vmem>>, %arg4: memref<512x256xbf16, #tpu.memory_space<vmem>>, %arg5: memref<1x256xf32, #tpu.memory_space<vmem>>, %arg6: memref<256x1024xbf16, #tpu.memory_space<vmem>>, %arg7: memref<1x1024xf32, #tpu.memory_space<vmem>>, %arg8: memref<8x512xf32, #tpu.memory_space<vmem>>, %arg9: memref<8x512xf32, #tpu.memory_space<vmem>>, %arg10: memref<8x512xf32, #tpu.memory_space<vmem>>, %arg11: memref<8x512xf32, #tpu.memory_space<vmem>>) attributes {dimension_semantics = [#tpu.dimension_semantics<parallel>], iteration_bounds = array<i64: 1>, scalar_prefetch = 0 : i64, scratch_operands = 0 : i64, tpu.core_type = #tpu.core_type<tc>, window_params = [{transform_indices = @transform_0, window_bounds = array<i64: 8, 768>}, {pipeline_mode = #tpu.pipeline_mode<synchronous>, transform_indices = @transform_1, window_bounds = array<i64: 768, 512>}, {pipeline_mode = #tpu.pipeline_mode<synchronous>, transform_indices = @transform_2, window_bounds = array<i64: 1, 512>}, {pipeline_mode = #tpu.pipeline_mode<synchronous>, transform_indices = @transform_3, window_bounds = array<i64: 512, 256>}, {pipeline_mode = #tpu.pipeline_mode<synchronous>, transform_indices = @transform_4, window_bounds = array<i64: 1, 256>}, {pipeline_mode = #tpu.pipeline_mode<synchronous>, transform_indices = @transform_5, window_bounds = array<i64: 256, 1024>}, {pipeline_mode = #tpu.pipeline_mode<synchronous>, transform_indices = @transform_6, window_bounds = array<i64: 1, 1024>}, {transform_indices = @transform_7, window_bounds = array<i64: 8, 512>}, {transform_indices = @transform_8, window_bounds = array<i64: 8, 512>}, {transform_indices = @transform_9, window_bounds = array<i64: 8, 512>}, {transform_indices = @transform_10, window_bounds = array<i64: 8, 512>}]} {
    %c0 = arith.constant 0 : index
    %c0_0 = arith.constant 0 : index
    %0 = vector.load %arg1[%c0, %c0_0] : memref<8x768xf32, #tpu.memory_space<vmem>>, vector<8x768xf32>
    %1 = arith.truncf %0 : vector<8x768xf32> to vector<8x768xbf16>
    %c0_1 = arith.constant 0 : index
    %c0_2 = arith.constant 0 : index
    %2 = vector.load %arg2[%c0_1, %c0_2] : memref<768x512xbf16, #tpu.memory_space<vmem>>, vector<768x512xbf16>
    %cst = arith.constant dense<0.000000e+00> : vector<8x512xf32>
    %3 = tpu.matmul %1, %2, %cst {dimension_numbers = #tpu.dot_dimension_numbers<[1], [0], [0], [1], [0, 0, 1, 1], [], []>} : vector<8x768xbf16>, vector<768x512xbf16>, vector<8x512xf32> -> vector<8x512xf32>
    %c0_3 = arith.constant 0 : index
    %c0_4 = arith.constant 0 : index
    %4 = vector.load %arg3[%c0_3, %c0_4] : memref<1x512xf32, #tpu.memory_space<vmem>>, vector<1x512xf32>
    %5 = vector.broadcast %4 : vector<1x512xf32> to vector<8x512xf32>
    %6 = arith.addf %3, %5 : vector<8x512xf32>
    %cst_5 = arith.constant 0.00999999977 : f32
    %7 = vector.broadcast %cst_5 : f32 to vector<8x512xf32>
    %8 = arith.mulf %7, %6 : vector<8x512xf32>
    %9 = arith.maximumf %6, %8 : vector<8x512xf32>
    %10 = arith.truncf %9 : vector<8x512xf32> to vector<8x512xbf16>
    %c0_6 = arith.constant 0 : index
    %c0_7 = arith.constant 0 : index
    %11 = vector.load %arg4[%c0_6, %c0_7] : memref<512x256xbf16, #tpu.memory_space<vmem>>, vector<512x256xbf16>
    %cst_8 = arith.constant dense<0.000000e+00> : vector<8x256xf32>
    %12 = tpu.matmul %10, %11, %cst_8 {dimension_numbers = #tpu.dot_dimension_numbers<[1], [0], [0], [1], [0, 0, 1, 1], [], []>} : vector<8x512xbf16>, vector<512x256xbf16>, vector<8x256xf32> -> vector<8x256xf32>
    %c0_9 = arith.constant 0 : index
    %c0_10 = arith.constant 0 : index
    %13 = vector.load %arg5[%c0_9, %c0_10] : memref<1x256xf32, #tpu.memory_space<vmem>>, vector<1x256xf32>
    %14 = vector.broadcast %13 : vector<1x256xf32> to vector<8x256xf32>
    %15 = arith.addf %12, %14 : vector<8x256xf32>
    %cst_11 = arith.constant 0.00999999977 : f32
    %16 = vector.broadcast %cst_11 : f32 to vector<8x256xf32>
    %17 = arith.mulf %16, %15 : vector<8x256xf32>
    %18 = arith.maximumf %15, %17 : vector<8x256xf32>
    %19 = arith.truncf %18 : vector<8x256xf32> to vector<8x256xbf16>
    %c0_12 = arith.constant 0 : index
    %c0_13 = arith.constant 0 : index
    %20 = vector.load %arg6[%c0_12, %c0_13] : memref<256x1024xbf16, #tpu.memory_space<vmem>>, vector<256x1024xbf16>
    %cst_14 = arith.constant dense<0.000000e+00> : vector<8x1024xf32>
    %21 = tpu.matmul %19, %20, %cst_14 {dimension_numbers = #tpu.dot_dimension_numbers<[1], [0], [0], [1], [0, 0, 1, 1], [], []>} : vector<8x256xbf16>, vector<256x1024xbf16>, vector<8x1024xf32> -> vector<8x1024xf32>
    %c0_15 = arith.constant 0 : index
    %c0_16 = arith.constant 0 : index
    %22 = vector.load %arg7[%c0_15, %c0_16] : memref<1x1024xf32, #tpu.memory_space<vmem>>, vector<1x1024xf32>
    %23 = vector.broadcast %22 : vector<1x1024xf32> to vector<8x1024xf32>
    %24 = arith.addf %21, %23 : vector<8x1024xf32>
    %25 = vector.extract_strided_slice %24 {offsets = [0, 0], sizes = [8, 512], strides = [1, 1]} : vector<8x1024xf32> to vector<8x512xf32>
    %26 = vector.extract_strided_slice %24 {offsets = [0, 512], sizes = [8, 512], strides = [1, 1]} : vector<8x1024xf32> to vector<8x512xf32>
    %cst_17 = arith.constant 5.000000e-01 : f32
    %27 = vector.broadcast %cst_17 : f32 to vector<8x512xf32>
    %28 = arith.mulf %27, %26 : vector<8x512xf32>
    %29 = math.exp %28 : vector<8x512xf32>
    %c0_18 = arith.constant 0 : index
    %c0_19 = arith.constant 0 : index
    %30 = vector.load %arg8[%c0_18, %c0_19] : memref<8x512xf32, #tpu.memory_space<vmem>>, vector<8x512xf32>
    %31 = arith.mulf %30, %29 : vector<8x512xf32>
    %32 = arith.addf %31, %25 : vector<8x512xf32>
    %c0_20 = arith.constant 0 : index
    %c0_21 = arith.constant 0 : index
    %33 = vector.load %arg9[%c0_20, %c0_21] : memref<8x512xf32, #tpu.memory_space<vmem>>, vector<8x512xf32>
    tpu.vector_store %arg9[%c0_20, %c0_21], %32 {strides = array<i32>} : memref<8x512xf32, #tpu.memory_space<vmem>>, vector<8x512xf32>,
    %c0_22 = arith.constant 0 : index
    %c0_23 = arith.constant 0 : index
    %34 = vector.load %arg10[%c0_22, %c0_23] : memref<8x512xf32, #tpu.memory_space<vmem>>, vector<8x512xf32>
    tpu.vector_store %arg10[%c0_22, %c0_23], %25 {strides = array<i32>} : memref<8x512xf32, #tpu.memory_space<vmem>>, vector<8x512xf32>,
    %c0_24 = arith.constant 0 : index
    %c0_25 = arith.constant 0 : index
    %35 = vector.load %arg11[%c0_24, %c0_25] : memref<8x512xf32, #tpu.memory_space<vmem>>, vector<8x512xf32>
    tpu.vector_store %arg11[%c0_24, %c0_25], %26 {strides = array<i32>} : memref<8x512xf32, #tpu.memory_space<vmem>>, vector<8x512xf32>,
    return
  }
  func.func @transform_0(%arg0: i32) -> (i32, i32) {
    %c0_i32 = arith.constant 0 : i32
    %c0_i32_0 = arith.constant 0 : i32
    return %arg0, %c0_i32 : i32, i32
  }
  func.func @transform_1(%arg0: i32) -> (i32, i32) {
    %c0_i32 = arith.constant 0 : i32
    %c0_i32_0 = arith.constant 0 : i32
    %c0_i32_1 = arith.constant 0 : i32
    return %c0_i32, %c0_i32_0 : i32, i32
  }
  func.func @transform_2(%arg0: i32) -> (i32, i32) {
    %c0_i32 = arith.constant 0 : i32
    %c0_i32_0 = arith.constant 0 : i32
    %c0_i32_1 = arith.constant 0 : i32
    return %c0_i32, %c0_i32_0 : i32, i32
  }
  func.func @transform_3(%arg0: i32) -> (i32, i32) {
    %c0_i32 = arith.constant 0 : i32
    %c0_i32_0 = arith.constant 0 : i32
    %c0_i32_1 = arith.constant 0 : i32
    return %c0_i32, %c0_i32_0 : i32, i32
  }
  func.func @transform_4(%arg0: i32) -> (i32, i32) {
    %c0_i32 = arith.constant 0 : i32
    %c0_i32_0 = arith.constant 0 : i32
    %c0_i32_1 = arith.constant 0 : i32
    return %c0_i32, %c0_i32_0 : i32, i32
  }
  func.func @transform_5(%arg0: i32) -> (i32, i32) {
    %c0_i32 = arith.constant 0 : i32
    %c0_i32_0 = arith.constant 0 : i32
    %c0_i32_1 = arith.constant 0 : i32
    return %c0_i32, %c0_i32_0 : i32, i32
  }
  func.func @transform_6(%arg0: i32) -> (i32, i32) {
    %c0_i32 = arith.constant 0 : i32
    %c0_i32_0 = arith.constant 0 : i32
    %c0_i32_1 = arith.constant 0 : i32
    return %c0_i32, %c0_i32_0 : i32, i32
  }
  func.func @transform_7(%arg0: i32) -> (i32, i32) {
    %c0_i32 = arith.constant 0 : i32
    %c0_i32_0 = arith.constant 0 : i32
    return %arg0, %c0_i32 : i32, i32
  }
  func.func @transform_8(%arg0: i32) -> (i32, i32) {
    %c0_i32 = arith.constant 0 : i32
    %c0_i32_0 = arith.constant 0 : i32
    return %arg0, %c0_i32 : i32, i32
  }
  func.func @transform_9(%arg0: i32) -> (i32, i32) {
    %c0_i32 = arith.constant 0 : i32
    %c0_i32_0 = arith.constant 0 : i32
    return %arg0, %c0_i32 : i32, i32
  }
  func.func @transform_10(%arg0: i32) -> (i32, i32) {
    %c0_i32 = arith.constant 0 : i32
    %c0_i32_0 = arith.constant 0 : i32
    return %arg0, %c0_i32 : i32, i32
  }
}

</mosaic_0001>

<llo_original>
// kernel: text_encoder_forward.1
$region0: #{text_encoder_forward.1}
  #allocation0 [shape = 'u32[]', space=smem, size = 0x4, offset = 0x4, fixed_abs, tag = 'smem constant byte address 0x4 - core index']
  #allocation1 [shape = 'u32[144,128]{1,0:T(1,128)}', space=vmem, size = 0x12000, scoped, tag = 'internal scratch']
  %s0 = inlined_call_operand.hbm [shape: f32[8,768], index: 0, kind: input, shape index: {}]
  %s1 = inlined_call_operand.hbm [shape: bf16[768,512], index: 1, kind: input, shape index: {}]
  %s2 = inlined_call_operand.hbm [shape: f32[1,512], index: 2, kind: input, shape index: {}]
  %s3 = inlined_call_operand.hbm [shape: bf16[512,256], index: 3, kind: input, shape index: {}]
  %s4 = inlined_call_operand.vmem [shape: f32[1,256], index: 4, kind: input, shape index: {}]
  %s5 = inlined_call_operand.hbm [shape: bf16[256,1024], index: 5, kind: input, shape index: {}]
  %s6 = inlined_call_operand.hbm [shape: f32[1,1024], index: 6, kind: input, shape index: {}]
  %s7 = inlined_call_operand.hbm [shape: f32[8,512], index: 7, kind: input, shape index: {}]
  %s8 = inlined_call_operand.vmem [shape: f32[8,512], index: 8, kind: output, shape index: {0}]
  %s9 = inlined_call_operand.vmem [shape: f32[8,512], index: 9, kind: output, shape index: {1}]
  %s10 = inlined_call_operand.vmem [shape: f32[8,512], index: 10, kind: output, shape index: {2}]
  %11 = xla_tuple %s8, %s9, %s10
  %s12 = sld [smem:[#allocation0]]
  $region86: #{text_encoder_forward.1} parent=0
    _
  %s14 = ssub.s32 1, %s12
  %s15 = scalar_select 0, %s14, %s12
  $region1: #{text_encoder_forward.1} parent=0
    #allocation2 [shape = 'u8[24576]{0}', space=vmem, size = 0x6000, scoped, tag = 'input window, operand 0, single buffered']
    #allocation3 [shape = 's32[1]{0}', space=sflag, size = 0x4, scoped, tag = 'scoped memory for text_encoder_forward.1']
    #allocation4 [shape = 'u8[786432]{0}', space=vmem, size = 0xc0000, scoped, tag = 'input window, operand 1, single buffered']
    #allocation5 [shape = 's32[1]{0}', space=sflag, size = 0x4, scoped, tag = 'scoped memory for text_encoder_forward.1']
    #allocation6 [shape = 'u8[2048]{0}', space=vmem, size = 0x800, scoped, tag = 'input window, operand 2, single buffered']
    #allocation7 [shape = 'u8[262144]{0}', space=vmem, size = 0x40000, scoped, tag = 'input window, operand 3, single buffered']
    #allocation8 [shape = 's32[1]{0}', space=sflag, size = 0x4, scoped, tag = 'scoped memory for text_encoder_forward.1']
    #allocation9 [shape = 'u8[524288]{0}', space=vmem, size = 0x80000, scoped, tag = 'input window, operand 5, single buffered']
    #allocation10 [shape = 'u8[4096]{0}', space=vmem, size = 0x1000, scoped, tag = 'input window, operand 6, single buffered']
    #allocation11 [shape = 's32[1]{0}', space=sflag, size = 0x4, scoped, tag = 'scoped memory for text_encoder_forward.1']
    #allocation12 [shape = 'u8[16384]{0}', space=vmem, size = 0x4000, scoped, tag = 'input window, operand 7, single buffered']
    %16 = vsyncpa [#allocation3], 0
    %17 = vsyncpa [#allocation5], 0
    %18 = vsyncpa [#allocation8], 0
    %19 = vsyncpa [#allocation11], 0
    // Predicated region
    $region2: #{text_encoder_forward.1} parent=1 // pred_check
      _
    $region3: #{text_encoder_forward.1} parent=1 // pred_check_branch
      %21 = sbr.rel (0) target = $region5
    $region4: #{text_encoder_forward.1} parent=1 // pred_region
      %s23 = ssub.s32 768, 768
      %24 = vsyncadd [#allocation3], %s23
      %s26 = sshll.u32 [#allocation2], 4
      %s27 = int_to_ptr.vmem [resolvable:$true] %s26
      %29 = dma.hbm_to_vmem [thread:$0]  %s0, 768, %s27, [#allocation3]
    $region5: #{text_encoder_forward.1} parent=1 // pred_fallthru
      _
    // Predicated region
    $region6: #{text_encoder_forward.1} parent=1 // pred_check
      _
    $region7: #{text_encoder_forward.1} parent=1 // pred_check_branch
      %31 = sbr.rel (0) target = $region9
    $region8: #{text_encoder_forward.1} parent=1 // pred_region
      %s33 = ssub.s32 24576, 24576
      %34 = vsyncadd [#allocation5], %s33
      %s35 = sshll.u32 [#allocation4], 4
      %s36 = int_to_ptr.vmem [resolvable:$true] %s35
      %41 = dma.hbm_to_vmem [thread:$0]  %s1, 24576, %s36, [#allocation5], 256, 256, 16
    $region9: #{text_encoder_forward.1} parent=1 // pred_fallthru
      _
    // Predicated region
    $region10: #{text_encoder_forward.1} parent=1 // pred_check
      _
    $region11: #{text_encoder_forward.1} parent=1 // pred_check_branch
      %43 = sbr.rel (0) target = $region13
    $region12: #{text_encoder_forward.1} parent=1 // pred_region
      %s45 = ssub.s32 64, 64
      %46 = vsyncadd [#allocation5], %s45
      %s48 = sshll.u32 [#allocation6], 4
      %s49 = int_to_ptr.vmem [resolvable:$true] %s48
      %51 = dma.hbm_to_vmem [thread:$0]  %s2, 64, %s49, [#allocation5]
    $region13: #{text_encoder_forward.1} parent=1 // pred_fallthru
      _
    // Predicated region
    $region14: #{text_encoder_forward.1} parent=1 // pred_check
      _
    $region15: #{text_encoder_forward.1} parent=1 // pred_check_branch
      %53 = sbr.rel (0) target = $region17
    $region16: #{text_encoder_forward.1} parent=1 // pred_region
      %s55 = ssub.s32 8192, 8192
      %56 = vsyncadd [#allocation8], %s55
      %s57 = sshll.u32 [#allocation7], 4
      %s58 = int_to_ptr.vmem [resolvable:$true] %s57
      %63 = dma.hbm_to_vmem [thread:$0]  %s3, 8192, %s58, [#allocation8], 128, 128, 8
    $region17: #{text_encoder_forward.1} parent=1 // pred_fallthru
      _
    // Predicated region
    $region18: #{text_encoder_forward.1} parent=1 // pred_check
      _
    $region19: #{text_encoder_forward.1} parent=1 // pred_check_branch
      %65 = sbr.rel (0) target = $region21
    $region20: #{text_encoder_forward.1} parent=1 // pred_region
      _
    $region21: #{text_encoder_forward.1} parent=1 // pred_fallthru
      _
    // Predicated region
    $region22: #{text_encoder_forward.1} parent=1 // pred_check
      _
    $region23: #{text_encoder_forward.1} parent=1 // pred_check_branch
      %67 = sbr.rel (0) target = $region25
    $region24: #{text_encoder_forward.1} parent=1 // pred_region
      %s69 = ssub.s32 16384, 16384
      %70 = vsyncadd [#allocation8], %s69
      %s71 = sshll.u32 [#allocation9], 4
      %s72 = int_to_ptr.vmem [resolvable:$true] %s71
      %77 = dma.hbm_to_vmem [thread:$0]  %s5, 16384, %s72, [#allocation8], 512, 512, 32
    $region25: #{text_encoder_forward.1} parent=1 // pred_fallthru
      _
    // Predicated region
    $region26: #{text_encoder_forward.1} parent=1 // pred_check
      _
    $region27: #{text_encoder_forward.1} parent=1 // pred_check_branch
      %79 = sbr.rel (0) target = $region29
    $region28: #{text_encoder_forward.1} parent=1 // pred_region
      %s81 = ssub.s32 128, 128
      %82 = vsyncadd [#allocation11], %s81
      %s84 = sshll.u32 [#allocation10], 4
      %s85 = int_to_ptr.vmem [resolvable:$true] %s84
      %87 = dma.hbm_to_vmem [thread:$0]  %s6, 128, %s85, [#allocation11]
    $region29: #{text_encoder_forward.1} parent=1 // pred_fallthru
      _
    // Predicated region
    $region30: #{text_encoder_forward.1} parent=1 // pred_check
      _
    $region31: #{text_encoder_forward.1} parent=1 // pred_check_branch
      %89 = sbr.rel (0) target = $region33
    $region32: #{text_encoder_forward.1} parent=1 // pred_region
      %s91 = ssub.s32 512, 512
      %92 = vsyncadd [#allocation11], %s91
      %s94 = sshll.u32 [#allocation12], 4
      %s95 = int_to_ptr.vmem [resolvable:$true] %s94
      %97 = dma.hbm_to_vmem [thread:$0]  %s7, 512, %s95, [#allocation11]
    $region33: #{text_encoder_forward.1} parent=1 // pred_fallthru
      _
    // Predicated region
    $region34: #{text_encoder_forward.1} parent=1 // pred_check
      _
    $region35: #{text_encoder_forward.1} parent=1 // pred_check_branch
      %99 = sbr.rel (0) target = $region37
    $region36: #{text_encoder_forward.1} parent=1 // pred_region
      %100 = dma.done [#allocation3], 768
    $region37: #{text_encoder_forward.1} parent=1 // pred_fallthru
      _
    // Predicated region
    $region38: #{text_encoder_forward.1} parent=1 // pred_check
      _
    $region39: #{text_encoder_forward.1} parent=1 // pred_check_branch
      %102 = sbr.rel (0) target = $region41
    $region40: #{text_encoder_forward.1} parent=1 // pred_region
      %103 = dma.done [#allocation5], 24576
    $region41: #{text_encoder_forward.1} parent=1 // pred_fallthru
      _
    // Predicated region
    $region42: #{text_encoder_forward.1} parent=1 // pred_check
      _
    $region43: #{text_encoder_forward.1} parent=1 // pred_check_branch
      %105 = sbr.rel (0) target = $region45
    $region44: #{text_encoder_forward.1} parent=1 // pred_region
      %106 = dma.done [#allocation5], 64
    $region45: #{text_encoder_forward.1} parent=1 // pred_fallthru
      _
    // Predicated region
    $region46: #{text_encoder_forward.1} parent=1 // pred_check
      _
    $region47: #{text_encoder_forward.1} parent=1 // pred_check_branch
      %108 = sbr.rel (0) target = $region49
    $region48: #{text_encoder_forward.1} parent=1 // pred_region
      %109 = dma.done [#allocation8], 8192
    $region49: #{text_encoder_forward.1} parent=1 // pred_fallthru
      _
    // Predicated region
    $region50: #{text_encoder_forward.1} parent=1 // pred_check
      _
    $region51: #{text_encoder_forward.1} parent=1 // pred_check_branch
      %111 = sbr.rel (0) target = $region53
    $region52: #{text_encoder_forward.1} parent=1 // pred_region
      %112 = dma.done [#allocation8], 16384
    $region53: #{text_encoder_forward.1} parent=1 // pred_fallthru
      _
    // Predicated region
    $region54: #{text_encoder_forward.1} parent=1 // pred_check
      _
    $region55: #{text_encoder_forward.1} parent=1 // pred_check_branch
      %114 = sbr.rel (0) target = $region57
    $region56: #{text_encoder_forward.1} parent=1 // pred_region
      %115 = dma.done [#allocation11], 128
    $region57: #{text_encoder_forward.1} parent=1 // pred_fallthru
      _
    // Predicated region
    $region58: #{text_encoder_forward.1} parent=1 // pred_check
      _
    $region59: #{text_encoder_forward.1} parent=1 // pred_check_branch
      %117 = sbr.rel (0) target = $region61
    $region60: #{text_encoder_forward.1} parent=1 // pred_region
      %118 = dma.done [#allocation11], 512
    $region61: #{text_encoder_forward.1} parent=1 // pred_fallthru
      _
    %v119 = vld [vmem:[#allocation2] sm:$0xff]
    %v120 = vld [vmem:[#allocation2 + $0x8] sm:$0xff]
    %v121 = vld [vmem:[#allocation2 + $0x10] sm:$0xff]
    %v122 = vld [vmem:[#allocation2 + $0x18] sm:$0xff]
    %v123 = vld [vmem:[#allocation2 + $0x20] sm:$0xff]
    %v124 = vld [vmem:[#allocation2 + $0x28] sm:$0xff]
    %v125 = vpack.c.bf16 %v119, %v119
    %v126 = vpack.c.bf16 %v120, %v120
    %v127 = vpack.c.bf16 %v121, %v121
    %v128 = vpack.c.bf16 %v122, %v122
    %v129 = vpack.c.bf16 %v123, %v123
    %v130 = vpack.c.bf16 %v124, %v124
    %v131 = vld [vmem:[#allocation4] sm:$0xff]
    %v132 = vld [vmem:[#allocation4 + $0x8] sm:$0xff]
    %v133 = vld [vmem:[#allocation4 + $0x10] sm:$0xff]
    %v134 = vld [vmem:[#allocation4 + $0x18] sm:$0xff]
    %v135 = vld [vmem:[#allocation4 + $0x20] sm:$0xff]
    %v136 = vld [vmem:[#allocation4 + $0x28] sm:$0xff]
    %v137 = vld [vmem:[#allocation4 + $0x30] sm:$0xff]
    %v138 = vld [vmem:[#allocation4 + $0x38] sm:$0xff]
    %v139 = vld [vmem:[#allocation4 + $0x40] sm:$0xff]
    %v140 = vld [vmem:[#allocation4 + $0x48] sm:$0xff]
    %v141 = vld [vmem:[#allocation4 + $0x50] sm:$0xff]
    %v142 = vld [vmem:[#allocation4 + $0x58] sm:$0xff]
    %v143 = vld [vmem:[#allocation4 + $0x60] sm:$0xff]
    %v144 = vld [vmem:[#allocation4 + $0x68] sm:$0xff]
    %v145 = vld [vmem:[#allocation4 + $0x70] sm:$0xff]
    %v146 = vld [vmem:[#allocation4 + $0x78] sm:$0xff]
    %v147 = vld [vmem:[#allocation4 + $0x80] sm:$0xff]
    %v148 = vld [vmem:[#allocation4 + $0x88] sm:$0xff]
    %v149 = vld [vmem:[#allocation4 + $0x90] sm:$0xff]
    %v150 = vld [vmem:[#allocation4 + $0x98] sm:$0xff]
    %v151 = vld [vmem:[#allocation4 + $0xa0] sm:$0xff]
    %v152 = vld [vmem:[#allocation4 + $0xa8] sm:$0xff]
    %v153 = vld [vmem:[#allocation4 + $0xb0] sm:$0xff]
    %v154 = vld [vmem:[#allocation4 + $0xb8] sm:$0xff]
    %v155 = vld [vmem:[#allocation4 + $0xc0] sm:$0xff]
    %v156 = vld [vmem:[#allocation4 + $0xc8] sm:$0xff]
    %v157 = vld [vmem:[#allocation4 + $0xd0] sm:$0xff]
    %v158 = vld [vmem:[#allocation4 + $0xd8] sm:$0xff]
    %v159 = vld [vmem:[#allocation4 + $0xe0] sm:$0xff]
    %v160 = vld [vmem:[#allocation4 + $0xe8] sm:$0xff]
    %v161 = vld [vmem:[#allocation4 + $0xf0] sm:$0xff]
    %v162 = vld [vmem:[#allocation4 + $0xf8] sm:$0xff]
    %v163 = vld [vmem:[#allocation4 + $0x100] sm:$0xff]
    %v164 = vld [vmem:[#allocation4 + $0x108] sm:$0xff]
    %v165 = vld [vmem:[#allocation4 + $0x110] sm:$0xff]
    %v166 = vld [vmem:[#allocation4 + $0x118] sm:$0xff]
    %v167 = vld [vmem:[#allocation4 + $0x120] sm:$0xff]
    %v168 = vld [vmem:[#allocation4 + $0x128] sm:$0xff]
    %v169 = vld [vmem:[#allocation4 + $0x130] sm:$0xff]
    %v170 = vld [vmem:[#allocation4 + $0x138] sm:$0xff]
    %v171 = vld [vmem:[#allocation4 + $0x140] sm:$0xff]
    %v172 = vld [vmem:[#allocation4 + $0x148] sm:$0xff]
    %v173 = vld [vmem:[#allocation4 + $0x150] sm:$0xff]
    %v174 = vld [vmem:[#allocation4 + $0x158] sm:$0xff]
    %v175 = vld [vmem:[#allocation4 + $0x160] sm:$0xff]
    %v176 = vld [vmem:[#allocation4 + $0x168] sm:$0xff]
    %v177 = vld [vmem:[#allocation4 + $0x170] sm:$0xff]
    %v178 = vld [vmem:[#allocation4 + $0x178] sm:$0xff]
    %v179 = vld [vmem:[#allocation4 + $0x180] sm:$0xff]
    %v180 = vld [vmem:[#allocation4 + $0x188] sm:$0xff]
    %v181 = vld [vmem:[#allocation4 + $0x190] sm:$0xff]
    %v182 = vld [vmem:[#allocation4 + $0x198] sm:$0xff]
    %v183 = vld [vmem:[#allocation4 + $0x1a0] sm:$0xff]
    %v184 = vld [vmem:[#allocation4 + $0x1a8] sm:$0xff]
    %v185 = vld [vmem:[#allocation4 + $0x1b0] sm:$0xff]
    %v186 = vld [vmem:[#allocation4 + $0x1b8] sm:$0xff]
    %v187 = vld [vmem:[#allocation4 + $0x1c0] sm:$0xff]
    %v188 = vld [vmem:[#allocation4 + $0x1c8] sm:$0xff]
    %v189 = vld [vmem:[#allocation4 + $0x1d0] sm:$0xff]
    %v190 = vld [vmem:[#allocation4 + $0x1d8] sm:$0xff]
    %v191 = vld [vmem:[#allocation4 + $0x1e0] sm:$0xff]
    %v192 = vld [vmem:[#allocation4 + $0x1e8] sm:$0xff]
    %v193 = vld [vmem:[#allocation4 + $0x1f0] sm:$0xff]
    %v194 = vld [vmem:[#allocation4 + $0x1f8] sm:$0xff]
    %v195 = vld [vmem:[#allocation4 + $0x200] sm:$0xff]
    %v196 = vld [vmem:[#allocation4 + $0x208] sm:$0xff]
    %v197 = vld [vmem:[#allocation4 + $0x210] sm:$0xff]
    %v198 = vld [vmem:[#allocation4 + $0x218] sm:$0xff]
    %v199 = vld [vmem:[#allocation4 + $0x220] sm:$0xff]
    %v200 = vld [vmem:[#allocation4 + $0x228] sm:$0xff]
    %v201 = vld [vmem:[#allocation4 + $0x230] sm:$0xff]
    %v202 = vld [vmem:[#allocation4 + $0x238] sm:$0xff]
    %v203 = vld [vmem:[#allocation4 + $0x240] sm:$0xff]
    %v204 = vld [vmem:[#allocation4 + $0x248] sm:$0xff]
    %v205 = vld [vmem:[#allocation4 + $0x250] sm:$0xff]
    %v206 = vld [vmem:[#allocation4 + $0x258] sm:$0xff]
    %v207 = vld [vmem:[#allocation4 + $0x260] sm:$0xff]
    %v208 = vld [vmem:[#allocation4 + $0x268] sm:$0xff]
    %v209 = vld [vmem:[#allocation4 + $0x270] sm:$0xff]
    %v210 = vld [vmem:[#allocation4 + $0x278] sm:$0xff]
    %v211 = vld [vmem:[#allocation4 + $0x280] sm:$0xff]
    %v212 = vld [vmem:[#allocation4 + $0x288] sm:$0xff]
    %v213 = vld [vmem:[#allocation4 + $0x290] sm:$0xff]
    %v214 = vld [vmem:[#allocation4 + $0x298] sm:$0xff]
    %v215 = vld [vmem:[#allocation4 + $0x2a0] sm:$0xff]
    %v216 = vld [vmem:[#allocation4 + $0x2a8] sm:$0xff]
    %v217 = vld [vmem:[#allocation4 + $0x2b0] sm:$0xff]
    %v218 = vld [vmem:[#allocation4 + $0x2b8] sm:$0xff]
    %v219 = vld [vmem:[#allocation4 + $0x2c0] sm:$0xff]
    %v220 = vld [vmem:[#allocation4 + $0x2c8] sm:$0xff]
    %v221 = vld [vmem:[#allocation4 + $0x2d0] sm:$0xff]
    %v222 = vld [vmem:[#allocation4 + $0x2d8] sm:$0xff]
    %v223 = vld [vmem:[#allocation4 + $0x2e0] sm:$0xff]
    %v224 = vld [vmem:[#allocation4 + $0x2e8] sm:$0xff]
    %v225 = vld [vmem:[#allocation4 + $0x2f0] sm:$0xff]
    %v226 = vld [vmem:[#allocation4 + $0x2f8] sm:$0xff]
    %v227 = vld [vmem:[#allocation4 + $0x300] sm:$0xff]
    %v228 = vld [vmem:[#allocation4 + $0x308] sm:$0xff]
    %v229 = vld [vmem:[#allocation4 + $0x310] sm:$0xff]
    %v230 = vld [vmem:[#allocation4 + $0x318] sm:$0xff]
    %v231 = vld [vmem:[#allocation4 + $0x320] sm:$0xff]
    %v232 = vld [vmem:[#allocation4 + $0x328] sm:$0xff]
    %v233 = vld [vmem:[#allocation4 + $0x330] sm:$0xff]
    %v234 = vld [vmem:[#allocation4 + $0x338] sm:$0xff]
    %v235 = vld [vmem:[#allocation4 + $0x340] sm:$0xff]
    %v236 = vld [vmem:[#allocation4 + $0x348] sm:$0xff]
    %v237 = vld [vmem:[#allocation4 + $0x350] sm:$0xff]
    %v238 = vld [vmem:[#allocation4 + $0x358] sm:$0xff]
    %v239 = vld [vmem:[#allocation4 + $0x360] sm:$0xff]
    %v240 = vld [vmem:[#allocation4 + $0x368] sm:$0xff]
    %v241 = vld [vmem:[#allocation4 + $0x370] sm:$0xff]
    %v242 = vld [vmem:[#allocation4 + $0x378] sm:$0xff]
    %v243 = vld [vmem:[#allocation4 + $0x380] sm:$0xff]
    %v244 = vld [vmem:[#allocation4 + $0x388] sm:$0xff]
    %v245 = vld [vmem:[#allocation4 + $0x390] sm:$0xff]
    %v246 = vld [vmem:[#allocation4 + $0x398] sm:$0xff]
    %v247 = vld [vmem:[#allocation4 + $0x3a0] sm:$0xff]
    %v248 = vld [vmem:[#allocation4 + $0x3a8] sm:$0xff]
    %v249 = vld [vmem:[#allocation4 + $0x3b0] sm:$0xff]
    %v250 = vld [vmem:[#allocation4 + $0x3b8] sm:$0xff]
    %v251 = vld [vmem:[#allocation4 + $0x3c0] sm:$0xff]
    %v252 = vld [vmem:[#allocation4 + $0x3c8] sm:$0xff]
    %v253 = vld [vmem:[#allocation4 + $0x3d0] sm:$0xff]
    %v254 = vld [vmem:[#allocation4 + $0x3d8] sm:$0xff]
    %v255 = vld [vmem:[#allocation4 + $0x3e0] sm:$0xff]
    %v256 = vld [vmem:[#allocation4 + $0x3e8] sm:$0xff]
    %v257 = vld [vmem:[#allocation4 + $0x3f0] sm:$0xff]
    %v258 = vld [vmem:[#allocation4 + $0x3f8] sm:$0xff]
    %v259 = vld [vmem:[#allocation4 + $0x400] sm:$0xff]
    %v260 = vld [vmem:[#allocation4 + $0x408] sm:$0xff]
    %v261 = vld [vmem:[#allocation4 + $0x410] sm:$0xff]
    %v262 = vld [vmem:[#allocation4 + $0x418] sm:$0xff]
    %v263 = vld [vmem:[#allocation4 + $0x420] sm:$0xff]
    %v264 = vld [vmem:[#allocation4 + $0x428] sm:$0xff]
    %v265 = vld [vmem:[#allocation4 + $0x430] sm:$0xff]
    %v266 = vld [vmem:[#allocation4 + $0x438] sm:$0xff]
    %v267 = vld [vmem:[#allocation4 + $0x440] sm:$0xff]
    %v268 = vld [vmem:[#allocation4 + $0x448] sm:$0xff]
    %v269 = vld [vmem:[#allocation4 + $0x450] sm:$0xff]
    %v270 = vld [vmem:[#allocation4 + $0x458] sm:$0xff]
    %v271 = vld [vmem:[#allocation4 + $0x460] sm:$0xff]
    %v272 = vld [vmem:[#allocation4 + $0x468] sm:$0xff]
    %v273 = vld [vmem:[#allocation4 + $0x470] sm:$0xff]
    %v274 = vld [vmem:[#allocation4 + $0x478] sm:$0xff]
    %v275 = vld [vmem:[#allocation4 + $0x480] sm:$0xff]
    %v276 = vld [vmem:[#allocation4 + $0x488] sm:$0xff]
    %v277 = vld [vmem:[#allocation4 + $0x490] sm:$0xff]
    %v278 = vld [vmem:[#allocation4 + $0x498] sm:$0xff]
    %v279 = vld [vmem:[#allocation4 + $0x4a0] sm:$0xff]
    %v280 = vld [vmem:[#allocation4 + $0x4a8] sm:$0xff]
    %v281 = vld [vmem:[#allocation4 + $0x4b0] sm:$0xff]
    %v282 = vld [vmem:[#allocation4 + $0x4b8] sm:$0xff]
    %v283 = vld [vmem:[#allocation4 + $0x4c0] sm:$0xff]
    %v284 = vld [vmem:[#allocation4 + $0x4c8] sm:$0xff]
    %v285 = vld [vmem:[#allocation4 + $0x4d0] sm:$0xff]
    %v286 = vld [vmem:[#allocation4 + $0x4d8] sm:$0xff]
    %v287 = vld [vmem:[#allocation4 + $0x4e0] sm:$0xff]
    %v288 = vld [vmem:[#allocation4 + $0x4e8] sm:$0xff]
    %v289 = vld [vmem:[#allocation4 + $0x4f0] sm:$0xff]
    %v290 = vld [vmem:[#allocation4 + $0x4f8] sm:$0xff]
    %v291 = vld [vmem:[#allocation4 + $0x500] sm:$0xff]
    %v292 = vld [vmem:[#allocation4 + $0x508] sm:$0xff]
    %v293 = vld [vmem:[#allocation4 + $0x510] sm:$0xff]
    %v294 = vld [vmem:[#allocation4 + $0x518] sm:$0xff]
    %v295 = vld [vmem:[#allocation4 + $0x520] sm:$0xff]
    %v296 = vld [vmem:[#allocation4 + $0x528] sm:$0xff]
    %v297 = vld [vmem:[#allocation4 + $0x530] sm:$0xff]
    %v298 = vld [vmem:[#allocation4 + $0x538] sm:$0xff]
    %v299 = vld [vmem:[#allocation4 + $0x540] sm:$0xff]
    %v300 = vld [vmem:[#allocation4 + $0x548] sm:$0xff]
    %v301 = vld [vmem:[#allocation4 + $0x550] sm:$0xff]
    %v302 = vld [vmem:[#allocation4 + $0x558] sm:$0xff]
    %v303 = vld [vmem:[#allocation4 + $0x560] sm:$0xff]
    %v304 = vld [vmem:[#allocation4 + $0x568] sm:$0xff]
    %v305 = vld [vmem:[#allocation4 + $0x570] sm:$0xff]
    %v306 = vld [vmem:[#allocation4 + $0x578] sm:$0xff]
    %v307 = vld [vmem:[#allocation4 + $0x580] sm:$0xff]
    %v308 = vld [vmem:[#allocation4 + $0x588] sm:$0xff]
    %v309 = vld [vmem:[#allocation4 + $0x590] sm:$0xff]
    %v310 = vld [vmem:[#allocation4 + $0x598] sm:$0xff]
    %v311 = vld [vmem:[#allocation4 + $0x5a0] sm:$0xff]
    %v312 = vld [vmem:[#allocation4 + $0x5a8] sm:$0xff]
    %v313 = vld [vmem:[#allocation4 + $0x5b0] sm:$0xff]
    %v314 = vld [vmem:[#allocation4 + $0x5b8] sm:$0xff]
    %v315 = vld [vmem:[#allocation4 + $0x5c0] sm:$0xff]
    %v316 = vld [vmem:[#allocation4 + $0x5c8] sm:$0xff]
    %v317 = vld [vmem:[#allocation4 + $0x5d0] sm:$0xff]
    %v318 = vld [vmem:[#allocation4 + $0x5d8] sm:$0xff]
    %v319 = vld [vmem:[#allocation4 + $0x5e0] sm:$0xff]
    %v320 = vld [vmem:[#allocation4 + $0x5e8] sm:$0xff]
    %v321 = vld [vmem:[#allocation4 + $0x5f0] sm:$0xff]
    %v322 = vld [vmem:[#allocation4 + $0x5f8] sm:$0xff]
    %v323 = vld [vmem:[#allocation6] sm:$0xf]
    %v325 = vlaneseq
    %v326 = vshrl.u32 %v325, 7
    %v327 = vsub.s32 0, %v326
    %v328 = vrot.slane %v323, %v327
    %v329 = vlaneseq
    %v330 = vshrl.u32 %v329, 7
    %v331 = vsub.s32 1, %v330
    %v332 = vrot.slane %v323, %v331
    %v333 = vlaneseq
    %v334 = vshrl.u32 %v333, 7
    %v335 = vsub.s32 2, %v334
    %v336 = vrot.slane %v323, %v335
    %v337 = vlaneseq
    %v338 = vshrl.u32 %v337, 7
    %v339 = vsub.s32 3, %v338
    %v340 = vrot.slane %v323, %v339
    %v537 = vunpack.c.l.b16 %v131
    %v538 = vunpack.c.h.b16 %v131
    %v539 = vunpack.c.l.b16 %v132
    %v540 = vunpack.c.h.b16 %v132
    %v541 = vunpack.c.l.b16 %v133
    %v542 = vunpack.c.h.b16 %v133
    %v543 = vunpack.c.l.b16 %v134
    %v544 = vunpack.c.h.b16 %v134
    %v545 = vunpack.c.l.b16 %v135
    %v546 = vunpack.c.h.b16 %v135
    %v547 = vunpack.c.l.b16 %v136
    %v548 = vunpack.c.h.b16 %v136
    %v549 = vunpack.c.l.b16 %v137
    %v550 = vunpack.c.h.b16 %v137
    %v551 = vunpack.c.l.b16 %v138
    %v552 = vunpack.c.h.b16 %v138
    %v553 = vunpack.c.l.b16 %v139
    %v554 = vunpack.c.h.b16 %v139
    %v555 = vunpack.c.l.b16 %v140
    %v556 = vunpack.c.h.b16 %v140
    %v557 = vunpack.c.l.b16 %v141
    %v558 = vunpack.c.h.b16 %v141
    %v559 = vunpack.c.l.b16 %v142
    %v560 = vunpack.c.h.b16 %v142
    %v561 = vunpack.c.l.b16 %v143
    %v562 = vunpack.c.h.b16 %v143
    %v563 = vunpack.c.l.b16 %v144
    %v564 = vunpack.c.h.b16 %v144
    %v565 = vunpack.c.l.b16 %v145
    %v566 = vunpack.c.h.b16 %v145
    %v567 = vunpack.c.l.b16 %v146
    %v568 = vunpack.c.h.b16 %v146
    %v569 = vunpack.c.l.b16 %v147
    %v570 = vunpack.c.h.b16 %v147
    %v571 = vunpack.c.l.b16 %v148
    %v572 = vunpack.c.h.b16 %v148
    %v573 = vunpack.c.l.b16 %v149
    %v574 = vunpack.c.h.b16 %v149
    %v575 = vunpack.c.l.b16 %v150
    %v576 = vunpack.c.h.b16 %v150
    %v577 = vunpack.c.l.b16 %v151
    %v578 = vunpack.c.h.b16 %v151
    %v579 = vunpack.c.l.b16 %v152
    %v580 = vunpack.c.h.b16 %v152
    %v581 = vunpack.c.l.b16 %v153
    %v582 = vunpack.c.h.b16 %v153
    %v583 = vunpack.c.l.b16 %v154
    %v584 = vunpack.c.h.b16 %v154
    %v585 = vunpack.c.l.b16 %v155
    %v586 = vunpack.c.h.b16 %v155
    %v587 = vunpack.c.l.b16 %v156
    %v588 = vunpack.c.h.b16 %v156
    %v589 = vunpack.c.l.b16 %v157
    %v590 = vunpack.c.h.b16 %v157
    %v591 = vunpack.c.l.b16 %v158
    %v592 = vunpack.c.h.b16 %v158
    %v593 = vunpack.c.l.b16 %v159
    %v594 = vunpack.c.h.b16 %v159
    %v595 = vunpack.c.l.b16 %v160
    %v596 = vunpack.c.h.b16 %v160
    %v597 = vunpack.c.l.b16 %v161
    %v598 = vunpack.c.h.b16 %v161
    %v599 = vunpack.c.l.b16 %v162
    %v600 = vunpack.c.h.b16 %v162
    %v601 = vunpack.c.l.b16 %v163
    %v602 = vunpack.c.h.b16 %v163
    %v603 = vunpack.c.l.b16 %v164
    %v604 = vunpack.c.h.b16 %v164
    %v605 = vunpack.c.l.b16 %v165
    %v606 = vunpack.c.h.b16 %v165
    %v607 = vunpack.c.l.b16 %v166
    %v608 = vunpack.c.h.b16 %v166
    %v609 = vunpack.c.l.b16 %v167
    %v610 = vunpack.c.h.b16 %v167
    %v611 = vunpack.c.l.b16 %v168
    %v612 = vunpack.c.h.b16 %v168
    %v613 = vunpack.c.l.b16 %v169
    %v614 = vunpack.c.h.b16 %v169
    %v615 = vunpack.c.l.b16 %v170
    %v616 = vunpack.c.h.b16 %v170
    %v617 = vunpack.c.l.b16 %v171
    %v618 = vunpack.c.h.b16 %v171
    %v619 = vunpack.c.l.b16 %v172
    %v620 = vunpack.c.h.b16 %v172
    %v621 = vunpack.c.l.b16 %v173
    %v622 = vunpack.c.h.b16 %v173
    %v623 = vunpack.c.l.b16 %v174
    %v624 = vunpack.c.h.b16 %v174
    %v625 = vunpack.c.l.b16 %v175
    %v626 = vunpack.c.h.b16 %v175
    %v627 = vunpack.c.l.b16 %v176
    %v628 = vunpack.c.h.b16 %v176
    %v629 = vunpack.c.l.b16 %v177
    %v630 = vunpack.c.h.b16 %v177
    %v631 = vunpack.c.l.b16 %v178
    %v632 = vunpack.c.h.b16 %v178
    %v633 = vunpack.c.l.b16 %v179
    %v634 = vunpack.c.h.b16 %v179
    %v635 = vunpack.c.l.b16 %v180
    %v636 = vunpack.c.h.b16 %v180
    %v637 = vunpack.c.l.b16 %v181
    %v638 = vunpack.c.h.b16 %v181
    %v639 = vunpack.c.l.b16 %v182
    %v640 = vunpack.c.h.b16 %v182
    %v641 = vunpack.c.l.b16 %v183
    %v642 = vunpack.c.h.b16 %v183
    %v643 = vunpack.c.l.b16 %v184
    %v644 = vunpack.c.h.b16 %v184
    %v645 = vunpack.c.l.b16 %v185
    %v646 = vunpack.c.h.b16 %v185
    %v647 = vunpack.c.l.b16 %v186
    %v648 = vunpack.c.h.b16 %v186
    %v649 = vunpack.c.l.b16 %v187
    %v650 = vunpack.c.h.b16 %v187
    %v651 = vunpack.c.l.b16 %v188
    %v652 = vunpack.c.h.b16 %v188
    %v653 = vunpack.c.l.b16 %v189
    %v654 = vunpack.c.h.b16 %v189
    %v655 = vunpack.c.l.b16 %v190
    %v656 = vunpack.c.h.b16 %v190
    %v657 = vunpack.c.l.b16 %v191
    %v658 = vunpack.c.h.b16 %v191
    %v659 = vunpack.c.l.b16 %v192
    %v660 = vunpack.c.h.b16 %v192
    %v661 = vunpack.c.l.b16 %v193
    %v662 = vunpack.c.h.b16 %v193
    %v663 = vunpack.c.l.b16 %v194
    %v664 = vunpack.c.h.b16 %v194
    %v665 = vunpack.c.l.b16 %v195
    %v666 = vunpack.c.h.b16 %v195
    %v667 = vunpack.c.l.b16 %v196
    %v668 = vunpack.c.h.b16 %v196
    %v669 = vunpack.c.l.b16 %v197
    %v670 = vunpack.c.h.b16 %v197
    %v671 = vunpack.c.l.b16 %v198
    %v672 = vunpack.c.h.b16 %v198
    %v673 = vunpack.c.l.b16 %v199
    %v674 = vunpack.c.h.b16 %v199
    %v675 = vunpack.c.l.b16 %v200
    %v676 = vunpack.c.h.b16 %v200
    %v677 = vunpack.c.l.b16 %v201
    %v678 = vunpack.c.h.b16 %v201
    %v679 = vunpack.c.l.b16 %v202
    %v680 = vunpack.c.h.b16 %v202
    %v681 = vunpack.c.l.b16 %v203
    %v682 = vunpack.c.h.b16 %v203
    %v683 = vunpack.c.l.b16 %v204
    %v684 = vunpack.c.h.b16 %v204
    %v685 = vunpack.c.l.b16 %v205
    %v686 = vunpack.c.h.b16 %v205
    %v687 = vunpack.c.l.b16 %v206
    %v688 = vunpack.c.h.b16 %v206
    %v689 = vunpack.c.l.b16 %v207
    %v690 = vunpack.c.h.b16 %v207
    %v691 = vunpack.c.l.b16 %v208
    %v692 = vunpack.c.h.b16 %v208
    %v693 = vunpack.c.l.b16 %v209
    %v694 = vunpack.c.h.b16 %v209
    %v695 = vunpack.c.l.b16 %v210
    %v696 = vunpack.c.h.b16 %v210
    %v697 = vunpack.c.l.b16 %v211
    %v698 = vunpack.c.h.b16 %v211
    %v699 = vunpack.c.l.b16 %v212
    %v700 = vunpack.c.h.b16 %v212
    %v701 = vunpack.c.l.b16 %v213
    %v702 = vunpack.c.h.b16 %v213
    %v703 = vunpack.c.l.b16 %v214
    %v704 = vunpack.c.h.b16 %v214
    %v705 = vunpack.c.l.b16 %v215
    %v706 = vunpack.c.h.b16 %v215
    %v707 = vunpack.c.l.b16 %v216
    %v708 = vunpack.c.h.b16 %v216
    %v709 = vunpack.c.l.b16 %v217
    %v710 = vunpack.c.h.b16 %v217
    %v711 = vunpack.c.l.b16 %v218
    %v712 = vunpack.c.h.b16 %v218
    %v713 = vunpack.c.l.b16 %v219
    %v714 = vunpack.c.h.b16 %v219
    %v715 = vunpack.c.l.b16 %v220
    %v716 = vunpack.c.h.b16 %v220
    %v717 = vunpack.c.l.b16 %v221
    %v718 = vunpack.c.h.b16 %v221
    %v719 = vunpack.c.l.b16 %v222
    %v720 = vunpack.c.h.b16 %v222
    %v721 = vunpack.c.l.b16 %v223
    %v722 = vunpack.c.h.b16 %v223
    %v723 = vunpack.c.l.b16 %v224
    %v724 = vunpack.c.h.b16 %v224
    %v725 = vunpack.c.l.b16 %v225
    %v726 = vunpack.c.h.b16 %v225
    %v727 = vunpack.c.l.b16 %v226
    %v728 = vunpack.c.h.b16 %v226
    %v729 = vunpack.c.l.b16 %v227
    %v730 = vunpack.c.h.b16 %v227
    %v731 = vunpack.c.l.b16 %v228
    %v732 = vunpack.c.h.b16 %v228
    %v733 = vunpack.c.l.b16 %v229
    %v734 = vunpack.c.h.b16 %v229
    %v735 = vunpack.c.l.b16 %v230
    %v736 = vunpack.c.h.b16 %v230
    %v737 = vunpack.c.l.b16 %v231
    %v738 = vunpack.c.h.b16 %v231
    %v739 = vunpack.c.l.b16 %v232
    %v740 = vunpack.c.h.b16 %v232
    %v741 = vunpack.c.l.b16 %v233
    %v742 = vunpack.c.h.b16 %v233
    %v743 = vunpack.c.l.b16 %v234
    %v744 = vunpack.c.h.b16 %v234
    %v745 = vunpack.c.l.b16 %v235
    %v746 = vunpack.c.h.b16 %v235
    %v747 = vunpack.c.l.b16 %v236
    %v748 = vunpack.c.h.b16 %v236
    %v749 = vunpack.c.l.b16 %v237
    %v750 = vunpack.c.h.b16 %v237
    %v751 = vunpack.c.l.b16 %v238
    %v752 = vunpack.c.h.b16 %v238
    %v753 = vunpack.c.l.b16 %v239
    %v754 = vunpack.c.h.b16 %v239
    %v755 = vunpack.c.l.b16 %v240
    %v756 = vunpack.c.h.b16 %v240
    %v757 = vunpack.c.l.b16 %v241
    %v758 = vunpack.c.h.b16 %v241
    %v759 = vunpack.c.l.b16 %v242
    %v760 = vunpack.c.h.b16 %v242
    %v761 = vunpack.c.l.b16 %v243
    %v762 = vunpack.c.h.b16 %v243
    %v763 = vunpack.c.l.b16 %v244
    %v764 = vunpack.c.h.b16 %v244
    %v765 = vunpack.c.l.b16 %v245
    %v766 = vunpack.c.h.b16 %v245
    %v767 = vunpack.c.l.b16 %v246
    %v768 = vunpack.c.h.b16 %v246
    %v769 = vunpack.c.l.b16 %v247
    %v770 = vunpack.c.h.b16 %v247
    %v771 = vunpack.c.l.b16 %v248
    %v772 = vunpack.c.h.b16 %v248
    %v773 = vunpack.c.l.b16 %v249
    %v774 = vunpack.c.h.b16 %v249
    %v775 = vunpack.c.l.b16 %v250
    %v776 = vunpack.c.h.b16 %v250
    %v777 = vunpack.c.l.b16 %v251
    %v778 = vunpack.c.h.b16 %v251
    %v779 = vunpack.c.l.b16 %v252
    %v780 = vunpack.c.h.b16 %v252
    %v781 = vunpack.c.l.b16 %v253
    %v782 = vunpack.c.h.b16 %v253
    %v783 = vunpack.c.l.b16 %v254
    %v784 = vunpack.c.h.b16 %v254
    %v785 = vunpack.c.l.b16 %v255
    %v786 = vunpack.c.h.b16 %v255
    %v787 = vunpack.c.l.b16 %v256
    %v788 = vunpack.c.h.b16 %v256
    %v789 = vunpack.c.l.b16 %v257
    %v790 = vunpack.c.h.b16 %v257
    %v791 = vunpack.c.l.b16 %v258
    %v792 = vunpack.c.h.b16 %v258
    %v793 = vunpack.c.l.b16 %v259
    %v794 = vunpack.c.h.b16 %v259
    %v795 = vunpack.c.l.b16 %v260
    %v796 = vunpack.c.h.b16 %v260
    %v797 = vunpack.c.l.b16 %v261
    %v798 = vunpack.c.h.b16 %v261
    %v799 = vunpack.c.l.b16 %v262
    %v800 = vunpack.c.h.b16 %v262
    %v801 = vunpack.c.l.b16 %v263
    %v802 = vunpack.c.h.b16 %v263
    %v803 = vunpack.c.l.b16 %v264
    %v804 = vunpack.c.h.b16 %v264
    %v805 = vunpack.c.l.b16 %v265
    %v806 = vunpack.c.h.b16 %v265
    %v807 = vunpack.c.l.b16 %v266
    %v808 = vunpack.c.h.b16 %v266
    %v809 = vunpack.c.l.b16 %v267
    %v810 = vunpack.c.h.b16 %v267
    %v811 = vunpack.c.l.b16 %v268
    %v812 = vunpack.c.h.b16 %v268
    %v813 = vunpack.c.l.b16 %v269
    %v814 = vunpack.c.h.b16 %v269
    %v815 = vunpack.c.l.b16 %v270
    %v816 = vunpack.c.h.b16 %v270
    %v817 = vunpack.c.l.b16 %v271
    %v818 = vunpack.c.h.b16 %v271
    %v819 = vunpack.c.l.b16 %v272
    %v820 = vunpack.c.h.b16 %v272
    %v821 = vunpack.c.l.b16 %v273
    %v822 = vunpack.c.h.b16 %v273
    %v823 = vunpack.c.l.b16 %v274
    %v824 = vunpack.c.h.b16 %v274
    %v825 = vunpack.c.l.b16 %v275
    %v826 = vunpack.c.h.b16 %v275
    %v827 = vunpack.c.l.b16 %v276
    %v828 = vunpack.c.h.b16 %v276
    %v829 = vunpack.c.l.b16 %v277
    %v830 = vunpack.c.h.b16 %v277
    %v831 = vunpack.c.l.b16 %v278
    %v832 = vunpack.c.h.b16 %v278
    %v833 = vunpack.c.l.b16 %v279
    %v834 = vunpack.c.h.b16 %v279
    %v835 = vunpack.c.l.b16 %v280
    %v836 = vunpack.c.h.b16 %v280
    %v837 = vunpack.c.l.b16 %v281
    %v838 = vunpack.c.h.b16 %v281
    %v839 = vunpack.c.l.b16 %v282
    %v840 = vunpack.c.h.b16 %v282
    %v841 = vunpack.c.l.b16 %v283
    %v842 = vunpack.c.h.b16 %v283
    %v843 = vunpack.c.l.b16 %v284
    %v844 = vunpack.c.h.b16 %v284
    %v845 = vunpack.c.l.b16 %v285
    %v846 = vunpack.c.h.b16 %v285
    %v847 = vunpack.c.l.b16 %v286
    %v848 = vunpack.c.h.b16 %v286
    %v849 = vunpack.c.l.b16 %v287
    %v850 = vunpack.c.h.b16 %v287
    %v851 = vunpack.c.l.b16 %v288
    %v852 = vunpack.c.h.b16 %v288
    %v853 = vunpack.c.l.b16 %v289
    %v854 = vunpack.c.h.b16 %v289
    %v855 = vunpack.c.l.b16 %v290
    %v856 = vunpack.c.h.b16 %v290
    %v857 = vunpack.c.l.b16 %v291
    %v858 = vunpack.c.h.b16 %v291
    %v859 = vunpack.c.l.b16 %v292
    %v860 = vunpack.c.h.b16 %v292
    %v861 = vunpack.c.l.b16 %v293
    %v862 = vunpack.c.h.b16 %v293
    %v863 = vunpack.c.l.b16 %v294
    %v864 = vunpack.c.h.b16 %v294
    %v865 = vunpack.c.l.b16 %v295
    %v866 = vunpack.c.h.b16 %v295
    %v867 = vunpack.c.l.b16 %v296
    %v868 = vunpack.c.h.b16 %v296
    %v869 = vunpack.c.l.b16 %v297
    %v870 = vunpack.c.h.b16 %v297
    %v871 = vunpack.c.l.b16 %v298
    %v872 = vunpack.c.h.b16 %v298
    %v873 = vunpack.c.l.b16 %v299
    %v874 = vunpack.c.h.b16 %v299
    %v875 = vunpack.c.l.b16 %v300
    %v876 = vunpack.c.h.b16 %v300
    %v877 = vunpack.c.l.b16 %v301
    %v878 = vunpack.c.h.b16 %v301
    %v879 = vunpack.c.l.b16 %v302
    %v880 = vunpack.c.h.b16 %v302
    %v881 = vunpack.c.l.b16 %v303
    %v882 = vunpack.c.h.b16 %v303
    %v883 = vunpack.c.l.b16 %v304
    %v884 = vunpack.c.h.b16 %v304
    %v885 = vunpack.c.l.b16 %v305
    %v886 = vunpack.c.h.b16 %v305
    %v887 = vunpack.c.l.b16 %v306
    %v888 = vunpack.c.h.b16 %v306
    %v889 = vunpack.c.l.b16 %v307
    %v890 = vunpack.c.h.b16 %v307
    %v891 = vunpack.c.l.b16 %v308
    %v892 = vunpack.c.h.b16 %v308
    %v893 = vunpack.c.l.b16 %v309
    %v894 = vunpack.c.h.b16 %v309
    %v895 = vunpack.c.l.b16 %v310
    %v896 = vunpack.c.h.b16 %v310
    %v897 = vunpack.c.l.b16 %v311
    %v898 = vunpack.c.h.b16 %v311
    %v899 = vunpack.c.l.b16 %v312
    %v900 = vunpack.c.h.b16 %v312
    %v901 = vunpack.c.l.b16 %v313
    %v902 = vunpack.c.h.b16 %v313
    %v903 = vunpack.c.l.b16 %v314
    %v904 = vunpack.c.h.b16 %v314
    %v905 = vunpack.c.l.b16 %v315
    %v906 = vunpack.c.h.b16 %v315
    %v907 = vunpack.c.l.b16 %v316
    %v908 = vunpack.c.h.b16 %v316
    %v909 = vunpack.c.l.b16 %v317
    %v910 = vunpack.c.h.b16 %v317
    %v911 = vunpack.c.l.b16 %v318
    %v912 = vunpack.c.h.b16 %v318
    %v913 = vunpack.c.l.b16 %v319
    %v914 = vunpack.c.h.b16 %v319
    %v915 = vunpack.c.l.b16 %v320
    %v916 = vunpack.c.h.b16 %v320
    %v917 = vunpack.c.l.b16 %v321
    %v918 = vunpack.c.h.b16 %v321
    %v919 = vunpack.c.l.b16 %v322
    %v920 = vunpack.c.h.b16 %v322
    %v921 = vpack.c.b16 %v541, %v537
    %v922 = vpack.c.b16 %v542, %v538
    %v923 = vpack.c.b16 %v543, %v539
    %v924 = vpack.c.b16 %v544, %v540
    %v925 = vpack.c.b16 %v549, %v545
    %v926 = vpack.c.b16 %v550, %v546
    %v927 = vpack.c.b16 %v551, %v547
    %v928 = vpack.c.b16 %v552, %v548
    %v929 = vpack.c.b16 %v557, %v553
    %v930 = vpack.c.b16 %v558, %v554
    %v931 = vpack.c.b16 %v559, %v555
    %v932 = vpack.c.b16 %v560, %v556
    %v933 = vpack.c.b16 %v565, %v561
    %v934 = vpack.c.b16 %v566, %v562
    %v935 = vpack.c.b16 %v567, %v563
    %v936 = vpack.c.b16 %v568, %v564
    %v937 = vpack.c.b16 %v573, %v569
    %v938 = vpack.c.b16 %v574, %v570
    %v939 = vpack.c.b16 %v575, %v571
    %v940 = vpack.c.b16 %v576, %v572
    %v941 = vpack.c.b16 %v581, %v577
    %v942 = vpack.c.b16 %v582, %v578
    %v943 = vpack.c.b16 %v583, %v579
    %v944 = vpack.c.b16 %v584, %v580
    %v945 = vpack.c.b16 %v589, %v585
    %v946 = vpack.c.b16 %v590, %v586
    %v947 = vpack.c.b16 %v591, %v587
    %v948 = vpack.c.b16 %v592, %v588
    %v949 = vpack.c.b16 %v597, %v593
    %v950 = vpack.c.b16 %v598, %v594
    %v951 = vpack.c.b16 %v599, %v595
    %v952 = vpack.c.b16 %v600, %v596
    %v953 = vpack.c.b16 %v605, %v601
    %v954 = vpack.c.b16 %v606, %v602
    %v955 = vpack.c.b16 %v607, %v603
    %v956 = vpack.c.b16 %v608, %v604
    %v957 = vpack.c.b16 %v613, %v609
    %v958 = vpack.c.b16 %v614, %v610
    %v959 = vpack.c.b16 %v615, %v611
    %v960 = vpack.c.b16 %v616, %v612
    %v961 = vpack.c.b16 %v621, %v617
    %v962 = vpack.c.b16 %v622, %v618
    %v963 = vpack.c.b16 %v623, %v619
    %v964 = vpack.c.b16 %v624, %v620
    %v965 = vpack.c.b16 %v629, %v625
    %v966 = vpack.c.b16 %v630, %v626
    %v967 = vpack.c.b16 %v631, %v627
    %v968 = vpack.c.b16 %v632, %v628
    %v969 = vpack.c.b16 %v637, %v633
    %v970 = vpack.c.b16 %v638, %v634
    %v971 = vpack.c.b16 %v639, %v635
    %v972 = vpack.c.b16 %v640, %v636
    %v973 = vpack.c.b16 %v645, %v641
    %v974 = vpack.c.b16 %v646, %v642
    %v975 = vpack.c.b16 %v647, %v643
    %v976 = vpack.c.b16 %v648, %v644
    %v977 = vpack.c.b16 %v653, %v649
    %v978 = vpack.c.b16 %v654, %v650
    %v979 = vpack.c.b16 %v655, %v651
    %v980 = vpack.c.b16 %v656, %v652
    %v981 = vpack.c.b16 %v661, %v657
    %v982 = vpack.c.b16 %v662, %v658
    %v983 = vpack.c.b16 %v663, %v659
    %v984 = vpack.c.b16 %v664, %v660
    %v985 = vpack.c.b16 %v669, %v665
    %v986 = vpack.c.b16 %v670, %v666
    %v987 = vpack.c.b16 %v671, %v667
    %v988 = vpack.c.b16 %v672, %v668
    %v989 = vpack.c.b16 %v677, %v673
    %v990 = vpack.c.b16 %v678, %v674
    %v991 = vpack.c.b16 %v679, %v675
    %v992 = vpack.c.b16 %v680, %v676
    %v993 = vpack.c.b16 %v685, %v681
    %v994 = vpack.c.b16 %v686, %v682
    %v995 = vpack.c.b16 %v687, %v683
    %v996 = vpack.c.b16 %v688, %v684
    %v997 = vpack.c.b16 %v693, %v689
    %v998 = vpack.c.b16 %v694, %v690
    %v999 = vpack.c.b16 %v695, %v691
    %v1000 = vpack.c.b16 %v696, %v692
    %v1001 = vpack.c.b16 %v701, %v697
    %v1002 = vpack.c.b16 %v702, %v698
    %v1003 = vpack.c.b16 %v703, %v699
    %v1004 = vpack.c.b16 %v704, %v700
    %v1005 = vpack.c.b16 %v709, %v705
    %v1006 = vpack.c.b16 %v710, %v706
    %v1007 = vpack.c.b16 %v711, %v707
    %v1008 = vpack.c.b16 %v712, %v708
    %v1009 = vpack.c.b16 %v717, %v713
    %v1010 = vpack.c.b16 %v718, %v714
    %v1011 = vpack.c.b16 %v719, %v715
    %v1012 = vpack.c.b16 %v720, %v716
    %v1013 = vpack.c.b16 %v725, %v721
    %v1014 = vpack.c.b16 %v726, %v722
    %v1015 = vpack.c.b16 %v727, %v723
    %v1016 = vpack.c.b16 %v728, %v724
    %v1017 = vpack.c.b16 %v733, %v729
    %v1018 = vpack.c.b16 %v734, %v730
    %v1019 = vpack.c.b16 %v735, %v731
    %v1020 = vpack.c.b16 %v736, %v732
    %v1021 = vpack.c.b16 %v741, %v737
    %v1022 = vpack.c.b16 %v742, %v738
    %v1023 = vpack.c.b16 %v743, %v739
    %v1024 = vpack.c.b16 %v744, %v740
    %v1025 = vpack.c.b16 %v749, %v745
    %v1026 = vpack.c.b16 %v750, %v746
    %v1027 = vpack.c.b16 %v751, %v747
    %v1028 = vpack.c.b16 %v752, %v748
    %v1029 = vpack.c.b16 %v757, %v753
    %v1030 = vpack.c.b16 %v758, %v754
    %v1031 = vpack.c.b16 %v759, %v755
    %v1032 = vpack.c.b16 %v760, %v756
    %v1033 = vpack.c.b16 %v765, %v761
    %v1034 = vpack.c.b16 %v766, %v762
    %v1035 = vpack.c.b16 %v767, %v763
    %v1036 = vpack.c.b16 %v768, %v764
    %v1037 = vpack.c.b16 %v773, %v769
    %v1038 = vpack.c.b16 %v774, %v770
    %v1039 = vpack.c.b16 %v775, %v771
    %v1040 = vpack.c.b16 %v776, %v772
    %v1041 = vpack.c.b16 %v781, %v777
    %v1042 = vpack.c.b16 %v782, %v778
    %v1043 = vpack.c.b16 %v783, %v779
    %v1044 = vpack.c.b16 %v784, %v780
    %v1045 = vpack.c.b16 %v789, %v785
    %v1046 = vpack.c.b16 %v790, %v786
    %v1047 = vpack.c.b16 %v791, %v787
    %v1048 = vpack.c.b16 %v792, %v788
    %v1049 = vpack.c.b16 %v797, %v793
    %v1050 = vpack.c.b16 %v798, %v794
    %v1051 = vpack.c.b16 %v799, %v795
    %v1052 = vpack.c.b16 %v800, %v796
    %v1053 = vpack.c.b16 %v805, %v801
    %v1054 = vpack.c.b16 %v806, %v802
    %v1055 = vpack.c.b16 %v807, %v803
    %v1056 = vpack.c.b16 %v808, %v804
    %v1057 = vpack.c.b16 %v813, %v809
    %v1058 = vpack.c.b16 %v814, %v810
    %v1059 = vpack.c.b16 %v815, %v811
    %v1060 = vpack.c.b16 %v816, %v812
    %v1061 = vpack.c.b16 %v821, %v817
    %v1062 = vpack.c.b16 %v822, %v818
    %v1063 = vpack.c.b16 %v823, %v819
    %v1064 = vpack.c.b16 %v824, %v820
    %v1065 = vpack.c.b16 %v829, %v825
    %v1066 = vpack.c.b16 %v830, %v826
    %v1067 = vpack.c.b16 %v831, %v827
    %v1068 = vpack.c.b16 %v832, %v828
    %v1069 = vpack.c.b16 %v837, %v833
    %v1070 = vpack.c.b16 %v838, %v834
    %v1071 = vpack.c.b16 %v839, %v835
    %v1072 = vpack.c.b16 %v840, %v836
    %v1073 = vpack.c.b16 %v845, %v841
    %v1074 = vpack.c.b16 %v846, %v842
    %v1075 = vpack.c.b16 %v847, %v843
    %v1076 = vpack.c.b16 %v848, %v844
    %v1077 = vpack.c.b16 %v853, %v849
    %v1078 = vpack.c.b16 %v854, %v850
    %v1079 = vpack.c.b16 %v855, %v851
    %v1080 = vpack.c.b16 %v856, %v852
    %v1081 = vpack.c.b16 %v861, %v857
    %v1082 = vpack.c.b16 %v862, %v858
    %v1083 = vpack.c.b16 %v863, %v859
    %v1084 = vpack.c.b16 %v864, %v860
    %v1085 = vpack.c.b16 %v869, %v865
    %v1086 = vpack.c.b16 %v870, %v866
    %v1087 = vpack.c.b16 %v871, %v867
    %v1088 = vpack.c.b16 %v872, %v868
    %v1089 = vpack.c.b16 %v877, %v873
    %v1090 = vpack.c.b16 %v878, %v874
    %v1091 = vpack.c.b16 %v879, %v875
    %v1092 = vpack.c.b16 %v880, %v876
    %v1093 = vpack.c.b16 %v885, %v881
    %v1094 = vpack.c.b16 %v886, %v882
    %v1095 = vpack.c.b16 %v887, %v883
    %v1096 = vpack.c.b16 %v888, %v884
    %v1097 = vpack.c.b16 %v893, %v889
    %v1098 = vpack.c.b16 %v894, %v890
    %v1099 = vpack.c.b16 %v895, %v891
    %v1100 = vpack.c.b16 %v896, %v892
    %v1101 = vpack.c.b16 %v901, %v897
    %v1102 = vpack.c.b16 %v902, %v898
    %v1103 = vpack.c.b16 %v903, %v899
    %v1104 = vpack.c.b16 %v904, %v900
    %v1105 = vpack.c.b16 %v909, %v905
    %v1106 = vpack.c.b16 %v910, %v906
    %v1107 = vpack.c.b16 %v911, %v907
    %v1108 = vpack.c.b16 %v912, %v908
    %v1109 = vpack.c.b16 %v917, %v913
    %v1110 = vpack.c.b16 %v918, %v914
    %v1111 = vpack.c.b16 %v919, %v915
    %v1112 = vpack.c.b16 %v920, %v916
    %1305 = vmatprep.subr.bf16.mxu0 %v950
    %1306 = vmatpush1.bf16.msra.mxu0 %v949
    %1307 = vmatprep.subr.bf16.mxu0 %v946
    %1308 = vmatpush1.bf16.msra.mxu0 %v945
    %1309 = vmatprep.subr.bf16.mxu0 %v942
    %1310 = vmatpush1.bf16.msra.mxu0 %v941
    %1311 = vmatprep.subr.bf16.mxu0 %v938
    %1312 = vmatpush1.bf16.msra.mxu0 %v937
    %1313 = vmatprep.subr.bf16.mxu0 %v934
    %1314 = vmatpush1.bf16.msra.mxu0 %v933
    %1315 = vmatprep.subr.bf16.mxu0 %v930
    %1316 = vmatpush1.bf16.msra.mxu0 %v929
    %1317 = vmatprep.subr.bf16.mxu0 %v926
    %1318 = vmatpush1.bf16.msra.mxu0 %v925
    %1319 = vmatprep.subr.bf16.mxu0 %v922
    %1320 = vmatpush1.bf16.msra.mxu0 %v921
    %1321 = vmatprep.subr.bf16.mxu0 %v982
    %1322 = vmatpush2.bf16.msra.mxu0 %v981
    %1323 = vmatprep.subr.bf16.mxu0 %v978
    %1324 = vmatpush2.bf16.msra.mxu0 %v977
    %1325 = vmatprep.subr.bf16.mxu0 %v974
    %1326 = vmatpush2.bf16.msra.mxu0 %v973
    %1327 = vmatprep.subr.bf16.mxu0 %v970
    %1328 = vmatpush2.bf16.msra.mxu0 %v969
    %1329 = vmatprep.subr.bf16.mxu0 %v966
    %1330 = vmatpush2.bf16.msra.mxu0 %v965
    %1331 = vmatprep.subr.bf16.mxu0 %v962
    %1332 = vmatpush2.bf16.msra.mxu0 %v961
    %1333 = vmatprep.subr.bf16.mxu0 %v958
    %1334 = vmatpush2.bf16.msra.mxu0 %v957
    %1335 = vmatprep.subr.bf16.mxu0 %v954
    %1336 = vmatpush2.bf16.msra.mxu0 %v953
    %1337 = vmatprep.mubr.bf16.mxu0 %v126
    %1338 = vmatmul.mubr.bf16.gmra.mxu0 %v125
    %v1339 = vpop.f32.mrf.mxu0
    %v1340 = vadd.f32 %v328, %v1339
    %v1341 = vpop.f32.mrf.mxu0
    %v1342 = vadd.f32 %v332, %v1341
    %v1343 = vpop.f32.mrf.mxu0
    %v1344 = vpop.f32.mrf.mxu0
    %1345 = vdwg.mxu0
    %1346 = vmatprep.subr.bf16.mxu0 %v1014
    %1347 = vmatpush1.bf16.msra.mxu0 %v1013
    %1348 = vmatprep.subr.bf16.mxu0 %v1010
    %1349 = vmatpush1.bf16.msra.mxu0 %v1009
    %1350 = vmatprep.subr.bf16.mxu0 %v1006
    %1351 = vmatpush1.bf16.msra.mxu0 %v1005
    %1352 = vmatprep.subr.bf16.mxu0 %v1002
    %1353 = vmatpush1.bf16.msra.mxu0 %v1001
    %1354 = vmatprep.subr.bf16.mxu0 %v998
    %1355 = vmatpush1.bf16.msra.mxu0 %v997
    %1356 = vmatprep.subr.bf16.mxu0 %v994
    %1357 = vmatpush1.bf16.msra.mxu0 %v993
    %1358 = vmatprep.subr.bf16.mxu0 %v990
    %1359 = vmatpush1.bf16.msra.mxu0 %v989
    %1360 = vmatprep.subr.bf16.mxu0 %v986
    %1361 = vmatpush1.bf16.msra.mxu0 %v985
    %1362 = vmatprep.subr.bf16.mxu0 %v1046
    %1363 = vmatpush2.bf16.msra.mxu0 %v1045
    %1364 = vmatprep.subr.bf16.mxu0 %v1042
    %1365 = vmatpush2.bf16.msra.mxu0 %v1041
    %1366 = vmatprep.subr.bf16.mxu0 %v1038
    %1367 = vmatpush2.bf16.msra.mxu0 %v1037
    %1368 = vmatprep.subr.bf16.mxu0 %v1034
    %1369 = vmatpush2.bf16.msra.mxu0 %v1033
    %1370 = vmatprep.subr.bf16.mxu0 %v1030
    %1371 = vmatpush2.bf16.msra.mxu0 %v1029
    %1372 = vmatprep.subr.bf16.mxu0 %v1026
    %1373 = vmatpush2.bf16.msra.mxu0 %v1025
    %1374 = vmatprep.subr.bf16.mxu0 %v1022
    %1375 = vmatpush2.bf16.msra.mxu0 %v1021
    %1376 = vmatprep.subr.bf16.mxu0 %v1018
    %1377 = vmatpush2.bf16.msra.mxu0 %v1017
    %1378 = vmatprep.mubr.bf16.mxu0 %v128
    %1379 = vmatmul.mubr.bf16.gmra.mxu0 %v127
    %v1380 = vpop.f32.mrf.mxu0
    %v1381 = vadd.f32 %v1340, %v1380
    %v1382 = vpop.f32.mrf.mxu0
    %v1383 = vadd.f32 %v1342, %v1382
    %v1384 = vpop.f32.mrf.mxu0
    %v1385 = vpop.f32.mrf.mxu0
    %1386 = vdwg.mxu0
    %1387 = vmatprep.subr.bf16.mxu0 %v1078
    %1388 = vmatpush1.bf16.msra.mxu0 %v1077
    %1389 = vmatprep.subr.bf16.mxu0 %v1074
    %1390 = vmatpush1.bf16.msra.mxu0 %v1073
    %1391 = vmatprep.subr.bf16.mxu0 %v1070
    %1392 = vmatpush1.bf16.msra.mxu0 %v1069
    %1393 = vmatprep.subr.bf16.mxu0 %v1066
    %1394 = vmatpush1.bf16.msra.mxu0 %v1065
    %1395 = vmatprep.subr.bf16.mxu0 %v1062
    %1396 = vmatpush1.bf16.msra.mxu0 %v1061
    %1397 = vmatprep.subr.bf16.mxu0 %v1058
    %1398 = vmatpush1.bf16.msra.mxu0 %v1057
    %1399 = vmatprep.subr.bf16.mxu0 %v1054
    %1400 = vmatpush1.bf16.msra.mxu0 %v1053
    %1401 = vmatprep.subr.bf16.mxu0 %v1050
    %1402 = vmatpush1.bf16.msra.mxu0 %v1049
    %1403 = vmatprep.subr.bf16.mxu0 %v1110
    %1404 = vmatpush2.bf16.msra.mxu0 %v1109
    %1405 = vmatprep.subr.bf16.mxu0 %v1106
    %1406 = vmatpush2.bf16.msra.mxu0 %v1105
    %1407 = vmatprep.subr.bf16.mxu0 %v1102
    %1408 = vmatpush2.bf16.msra.mxu0 %v1101
    %1409 = vmatprep.subr.bf16.mxu0 %v1098
    %1410 = vmatpush2.bf16.msra.mxu0 %v1097
    %1411 = vmatprep.subr.bf16.mxu0 %v1094
    %1412 = vmatpush2.bf16.msra.mxu0 %v1093
    %1413 = vmatprep.subr.bf16.mxu0 %v1090
    %1414 = vmatpush2.bf16.msra.mxu0 %v1089
    %1415 = vmatprep.subr.bf16.mxu0 %v1086
    %1416 = vmatpush2.bf16.msra.mxu0 %v1085
    %1417 = vmatprep.subr.bf16.mxu0 %v1082
    %1418 = vmatpush2.bf16.msra.mxu0 %v1081
    %1419 = vmatprep.mubr.bf16.mxu0 %v130
    %1420 = vmatmul.mubr.bf16.gmra.mxu0 %v129
    %v1421 = vpop.f32.mrf.mxu0
    %v1422 = vadd.f32 %v1381, %v1421
    %v1423 = vpop.f32.mrf.mxu0
    %v1424 = vadd.f32 %v1383, %v1423
    %v1425 = vpop.f32.mrf.mxu0
    %v1426 = vpop.f32.mrf.mxu0
    %1427 = vdwg.mxu0
    %1428 = vmatprep.subr.bf16.mxu0 %v952
    %1429 = vmatpush1.bf16.msra.mxu0 %v951
    %1430 = vmatprep.subr.bf16.mxu0 %v948
    %1431 = vmatpush1.bf16.msra.mxu0 %v947
    %1432 = vmatprep.subr.bf16.mxu0 %v944
    %1433 = vmatpush1.bf16.msra.mxu0 %v943
    %1434 = vmatprep.subr.bf16.mxu0 %v940
    %1435 = vmatpush1.bf16.msra.mxu0 %v939
    %1436 = vmatprep.subr.bf16.mxu0 %v936
    %1437 = vmatpush1.bf16.msra.mxu0 %v935
    %1438 = vmatprep.subr.bf16.mxu0 %v932
    %1439 = vmatpush1.bf16.msra.mxu0 %v931
    %1440 = vmatprep.subr.bf16.mxu0 %v928
    %1441 = vmatpush1.bf16.msra.mxu0 %v927
    %1442 = vmatprep.subr.bf16.mxu0 %v924
    %1443 = vmatpush1.bf16.msra.mxu0 %v923
    %1444 = vmatprep.subr.bf16.mxu0 %v984
    %1445 = vmatpush2.bf16.msra.mxu0 %v983
    %1446 = vmatprep.subr.bf16.mxu0 %v980
    %1447 = vmatpush2.bf16.msra.mxu0 %v979
    %1448 = vmatprep.subr.bf16.mxu0 %v976
    %1449 = vmatpush2.bf16.msra.mxu0 %v975
    %1450 = vmatprep.subr.bf16.mxu0 %v972
    %1451 = vmatpush2.bf16.msra.mxu0 %v971
    %1452 = vmatprep.subr.bf16.mxu0 %v968
    %1453 = vmatpush2.bf16.msra.mxu0 %v967
    %1454 = vmatprep.subr.bf16.mxu0 %v964
    %1455 = vmatpush2.bf16.msra.mxu0 %v963
    %1456 = vmatprep.subr.bf16.mxu0 %v960
    %1457 = vmatpush2.bf16.msra.mxu0 %v959
    %1458 = vmatprep.subr.bf16.mxu0 %v956
    %1459 = vmatpush2.bf16.msra.mxu0 %v955
    %1460 = vmatprep.mubr.bf16.mxu0 %v126
    %1461 = vmatmul.mubr.bf16.gmra.mxu0 %v125
    %v1462 = vpop.f32.mrf.mxu0
    %v1463 = vadd.f32 %v336, %v1462
    %v1464 = vpop.f32.mrf.mxu0
    %v1465 = vadd.f32 %v340, %v1464
    %v1466 = vpop.f32.mrf.mxu0
    %v1467 = vpop.f32.mrf.mxu0
    %1468 = vdwg.mxu0
    %1469 = vmatprep.subr.bf16.mxu0 %v1016
    %1470 = vmatpush1.bf16.msra.mxu0 %v1015
    %1471 = vmatprep.subr.bf16.mxu0 %v1012
    %1472 = vmatpush1.bf16.msra.mxu0 %v1011
    %1473 = vmatprep.subr.bf16.mxu0 %v1008
    %1474 = vmatpush1.bf16.msra.mxu0 %v1007
    %1475 = vmatprep.subr.bf16.mxu0 %v1004
    %1476 = vmatpush1.bf16.msra.mxu0 %v1003
    %1477 = vmatprep.subr.bf16.mxu0 %v1000
    %1478 = vmatpush1.bf16.msra.mxu0 %v999
    %1479 = vmatprep.subr.bf16.mxu0 %v996
    %1480 = vmatpush1.bf16.msra.mxu0 %v995
    %1481 = vmatprep.subr.bf16.mxu0 %v992
    %1482 = vmatpush1.bf16.msra.mxu0 %v991
    %1483 = vmatprep.subr.bf16.mxu0 %v988
    %1484 = vmatpush1.bf16.msra.mxu0 %v987
    %1485 = vmatprep.subr.bf16.mxu0 %v1048
    %1486 = vmatpush2.bf16.msra.mxu0 %v1047
    %1487 = vmatprep.subr.bf16.mxu0 %v1044
    %1488 = vmatpush2.bf16.msra.mxu0 %v1043
    %1489 = vmatprep.subr.bf16.mxu0 %v1040
    %1490 = vmatpush2.bf16.msra.mxu0 %v1039
    %1491 = vmatprep.subr.bf16.mxu0 %v1036
    %1492 = vmatpush2.bf16.msra.mxu0 %v1035
    %1493 = vmatprep.subr.bf16.mxu0 %v1032
    %1494 = vmatpush2.bf16.msra.mxu0 %v1031
    %1495 = vmatprep.subr.bf16.mxu0 %v1028
    %1496 = vmatpush2.bf16.msra.mxu0 %v1027
    %1497 = vmatprep.subr.bf16.mxu0 %v1024
    %1498 = vmatpush2.bf16.msra.mxu0 %v1023
    %1499 = vmatprep.subr.bf16.mxu0 %v1020
    %1500 = vmatpush2.bf16.msra.mxu0 %v1019
    %1501 = vmatprep.mubr.bf16.mxu0 %v128
    %1502 = vmatmul.mubr.bf16.gmra.mxu0 %v127
    %v1503 = vpop.f32.mrf.mxu0
    %v1504 = vadd.f32 %v1463, %v1503
    %v1505 = vpop.f32.mrf.mxu0
    %v1506 = vadd.f32 %v1465, %v1505
    %v1507 = vpop.f32.mrf.mxu0
    %v1508 = vpop.f32.mrf.mxu0
    %1509 = vdwg.mxu0
    %1510 = vmatprep.subr.bf16.mxu0 %v1080
    %1511 = vmatpush1.bf16.msra.mxu0 %v1079
    %1512 = vmatprep.subr.bf16.mxu0 %v1076
    %1513 = vmatpush1.bf16.msra.mxu0 %v1075
    %1514 = vmatprep.subr.bf16.mxu0 %v1072
    %1515 = vmatpush1.bf16.msra.mxu0 %v1071
    %1516 = vmatprep.subr.bf16.mxu0 %v1068
    %1517 = vmatpush1.bf16.msra.mxu0 %v1067
    %1518 = vmatprep.subr.bf16.mxu0 %v1064
    %1519 = vmatpush1.bf16.msra.mxu0 %v1063
    %1520 = vmatprep.subr.bf16.mxu0 %v1060
    %1521 = vmatpush1.bf16.msra.mxu0 %v1059
    %1522 = vmatprep.subr.bf16.mxu0 %v1056
    %1523 = vmatpush1.bf16.msra.mxu0 %v1055
    %1524 = vmatprep.subr.bf16.mxu0 %v1052
    %1525 = vmatpush1.bf16.msra.mxu0 %v1051
    %1526 = vmatprep.subr.bf16.mxu0 %v1112
    %1527 = vmatpush2.bf16.msra.mxu0 %v1111
    %1528 = vmatprep.subr.bf16.mxu0 %v1108
    %1529 = vmatpush2.bf16.msra.mxu0 %v1107
    %1530 = vmatprep.subr.bf16.mxu0 %v1104
    %1531 = vmatpush2.bf16.msra.mxu0 %v1103
    %1532 = vmatprep.subr.bf16.mxu0 %v1100
    %1533 = vmatpush2.bf16.msra.mxu0 %v1099
    %1534 = vmatprep.subr.bf16.mxu0 %v1096
    %1535 = vmatpush2.bf16.msra.mxu0 %v1095
    %1536 = vmatprep.subr.bf16.mxu0 %v1092
    %1537 = vmatpush2.bf16.msra.mxu0 %v1091
    %1538 = vmatprep.subr.bf16.mxu0 %v1088
    %1539 = vmatpush2.bf16.msra.mxu0 %v1087
    %1540 = vmatprep.subr.bf16.mxu0 %v1084
    %1541 = vmatpush2.bf16.msra.mxu0 %v1083
    %1542 = vmatprep.mubr.bf16.mxu0 %v130
    %1543 = vmatmul.mubr.bf16.gmra.mxu0 %v129
    %v1544 = vpop.f32.mrf.mxu0
    %v1545 = vadd.f32 %v1504, %v1544
    %v1546 = vpop.f32.mrf.mxu0
    %v1547 = vadd.f32 %v1506, %v1546
    %v1548 = vpop.f32.mrf.mxu0
    %v1549 = vpop.f32.mrf.mxu0
    %1550 = vdwg.mxu0
    %v1551 = vmul.f32 %v1422, 0.01
    %v1552 = vmul.f32 %v1424, 0.01
    %v1553 = vmul.f32 %v1545, 0.01
    %v1554 = vmul.f32 %v1547, 0.01
    %v1555 = vmax.f32 %v1422, %v1551
    %v1556 = vmax.f32 %v1424, %v1552
    %v1557 = vmax.f32 %v1545, %v1553
    %v1558 = vmax.f32 %v1547, %v1554
    %v1559 = vpack.c.bf16 %v1555, %v1555
    %v1560 = vpack.c.bf16 %v1556, %v1556
    %v1561 = vpack.c.bf16 %v1557, %v1557
    %v1562 = vpack.c.bf16 %v1558, %v1558
    %v1563 = vld [vmem:[#allocation7] sm:$0xff]
    %v1564 = vld [vmem:[#allocation7 + $0x8] sm:$0xff]
    %v1565 = vld [vmem:[#allocation7 + $0x10] sm:$0xff]
    %v1566 = vld [vmem:[#allocation7 + $0x18] sm:$0xff]
    %v1567 = vld [vmem:[#allocation7 + $0x20] sm:$0xff]
    %v1568 = vld [vmem:[#allocation7 + $0x28] sm:$0xff]
    %v1569 = vld [vmem:[#allocation7 + $0x30] sm:$0xff]
    %v1570 = vld [vmem:[#allocation7 + $0x38] sm:$0xff]
    %v1571 = vld [vmem:[#allocation7 + $0x40] sm:$0xff]
    %v1572 = vld [vmem:[#allocation7 + $0x48] sm:$0xff]
    %v1573 = vld [vmem:[#allocation7 + $0x50] sm:$0xff]
    %v1574 = vld [vmem:[#allocation7 + $0x58] sm:$0xff]
    %v1575 = vld [vmem:[#allocation7 + $0x60] sm:$0xff]
    %v1576 = vld [vmem:[#allocation7 + $0x68] sm:$0xff]
    %v1577 = vld [vmem:[#allocation7 + $0x70] sm:$0xff]
    %v1578 = vld [vmem:[#allocation7 + $0x78] sm:$0xff]
    %v1579 = vld [vmem:[#allocation7 + $0x80] sm:$0xff]
    %v1580 = vld [vmem:[#allocation7 + $0x88] sm:$0xff]
    %v1581 = vld [vmem:[#allocation7 + $0x90] sm:$0xff]
    %v1582 = vld [vmem:[#allocation7 + $0x98] sm:$0xff]
    %v1583 = vld [vmem:[#allocation7 + $0xa0] sm:$0xff]
    %v1584 = vld [vmem:[#allocation7 + $0xa8] sm:$0xff]
    %v1585 = vld [vmem:[#allocation7 + $0xb0] sm:$0xff]
    %v1586 = vld [vmem:[#allocation7 + $0xb8] sm:$0xff]
    %v1587 = vld [vmem:[#allocation7 + $0xc0] sm:$0xff]
    %v1588 = vld [vmem:[#allocation7 + $0xc8] sm:$0xff]
    %v1589 = vld [vmem:[#allocation7 + $0xd0] sm:$0xff]
    %v1590 = vld [vmem:[#allocation7 + $0xd8] sm:$0xff]
    %v1591 = vld [vmem:[#allocation7 + $0xe0] sm:$0xff]
    %v1592 = vld [vmem:[#allocation7 + $0xe8] sm:$0xff]
    %v1593 = vld [vmem:[#allocation7 + $0xf0] sm:$0xff]
    %v1594 = vld [vmem:[#allocation7 + $0xf8] sm:$0xff]
    %v1595 = vld [vmem:[#allocation7 + $0x100] sm:$0xff]
    %v1596 = vld [vmem:[#allocation7 + $0x108] sm:$0xff]
    %v1597 = vld [vmem:[#allocation7 + $0x110] sm:$0xff]
    %v1598 = vld [vmem:[#allocation7 + $0x118] sm:$0xff]
    %v1599 = vld [vmem:[#allocation7 + $0x120] sm:$0xff]
    %v1600 = vld [vmem:[#allocation7 + $0x128] sm:$0xff]
    %v1601 = vld [vmem:[#allocation7 + $0x130] sm:$0xff]
    %v1602 = vld [vmem:[#allocation7 + $0x138] sm:$0xff]
    %v1603 = vld [vmem:[#allocation7 + $0x140] sm:$0xff]
    %v1604 = vld [vmem:[#allocation7 + $0x148] sm:$0xff]
    %v1605 = vld [vmem:[#allocation7 + $0x150] sm:$0xff]
    %v1606 = vld [vmem:[#allocation7 + $0x158] sm:$0xff]
    %v1607 = vld [vmem:[#allocation7 + $0x160] sm:$0xff]
    %v1608 = vld [vmem:[#allocation7 + $0x168] sm:$0xff]
    %v1609 = vld [vmem:[#allocation7 + $0x170] sm:$0xff]
    %v1610 = vld [vmem:[#allocation7 + $0x178] sm:$0xff]
    %v1611 = vld [vmem:[#allocation7 + $0x180] sm:$0xff]
    %v1612 = vld [vmem:[#allocation7 + $0x188] sm:$0xff]
    %v1613 = vld [vmem:[#allocation7 + $0x190] sm:$0xff]
    %v1614 = vld [vmem:[#allocation7 + $0x198] sm:$0xff]
    %v1615 = vld [vmem:[#allocation7 + $0x1a0] sm:$0xff]
    %v1616 = vld [vmem:[#allocation7 + $0x1a8] sm:$0xff]
    %v1617 = vld [vmem:[#allocation7 + $0x1b0] sm:$0xff]
    %v1618 = vld [vmem:[#allocation7 + $0x1b8] sm:$0xff]
    %v1619 = vld [vmem:[#allocation7 + $0x1c0] sm:$0xff]
    %v1620 = vld [vmem:[#allocation7 + $0x1c8] sm:$0xff]
    %v1621 = vld [vmem:[#allocation7 + $0x1d0] sm:$0xff]
    %v1622 = vld [vmem:[#allocation7 + $0x1d8] sm:$0xff]
    %v1623 = vld [vmem:[#allocation7 + $0x1e0] sm:$0xff]
    %v1624 = vld [vmem:[#allocation7 + $0x1e8] sm:$0xff]
    %v1625 = vld [vmem:[#allocation7 + $0x1f0] sm:$0xff]
    %v1626 = vld [vmem:[#allocation7 + $0x1f8] sm:$0xff]
    %v1627 = vld [vmem:[%s4] sm:$0x3]
    %v1629 = vlaneseq
    %v1630 = vshrl.u32 %v1629, 7
    %v1631 = vsub.s32 0, %v1630
    %v1632 = vrot.slane %v1627, %v1631
    %v1633 = vlaneseq
    %v1634 = vshrl.u32 %v1633, 7
    %v1635 = vsub.s32 1, %v1634
    %v1636 = vrot.slane %v1627, %v1635
    %v1703 = vunpack.c.l.b16 %v1563
    %v1704 = vunpack.c.h.b16 %v1563
    %v1705 = vunpack.c.l.b16 %v1564
    %v1706 = vunpack.c.h.b16 %v1564
    %v1707 = vunpack.c.l.b16 %v1565
    %v1708 = vunpack.c.h.b16 %v1565
    %v1709 = vunpack.c.l.b16 %v1566
    %v1710 = vunpack.c.h.b16 %v1566
    %v1711 = vunpack.c.l.b16 %v1567
    %v1712 = vunpack.c.h.b16 %v1567
    %v1713 = vunpack.c.l.b16 %v1568
    %v1714 = vunpack.c.h.b16 %v1568
    %v1715 = vunpack.c.l.b16 %v1569
    %v1716 = vunpack.c.h.b16 %v1569
    %v1717 = vunpack.c.l.b16 %v1570
    %v1718 = vunpack.c.h.b16 %v1570
    %v1719 = vunpack.c.l.b16 %v1571
    %v1720 = vunpack.c.h.b16 %v1571
    %v1721 = vunpack.c.l.b16 %v1572
    %v1722 = vunpack.c.h.b16 %v1572
    %v1723 = vunpack.c.l.b16 %v1573
    %v1724 = vunpack.c.h.b16 %v1573
    %v1725 = vunpack.c.l.b16 %v1574
    %v1726 = vunpack.c.h.b16 %v1574
    %v1727 = vunpack.c.l.b16 %v1575
    %v1728 = vunpack.c.h.b16 %v1575
    %v1729 = vunpack.c.l.b16 %v1576
    %v1730 = vunpack.c.h.b16 %v1576
    %v1731 = vunpack.c.l.b16 %v1577
    %v1732 = vunpack.c.h.b16 %v1577
    %v1733 = vunpack.c.l.b16 %v1578
    %v1734 = vunpack.c.h.b16 %v1578
    %v1735 = vunpack.c.l.b16 %v1579
    %v1736 = vunpack.c.h.b16 %v1579
    %v1737 = vunpack.c.l.b16 %v1580
    %v1738 = vunpack.c.h.b16 %v1580
    %v1739 = vunpack.c.l.b16 %v1581
    %v1740 = vunpack.c.h.b16 %v1581
    %v1741 = vunpack.c.l.b16 %v1582
    %v1742 = vunpack.c.h.b16 %v1582
    %v1743 = vunpack.c.l.b16 %v1583
    %v1744 = vunpack.c.h.b16 %v1583
    %v1745 = vunpack.c.l.b16 %v1584
    %v1746 = vunpack.c.h.b16 %v1584
    %v1747 = vunpack.c.l.b16 %v1585
    %v1748 = vunpack.c.h.b16 %v1585
    %v1749 = vunpack.c.l.b16 %v1586
    %v1750 = vunpack.c.h.b16 %v1586
    %v1751 = vunpack.c.l.b16 %v1587
    %v1752 = vunpack.c.h.b16 %v1587
    %v1753 = vunpack.c.l.b16 %v1588
    %v1754 = vunpack.c.h.b16 %v1588
    %v1755 = vunpack.c.l.b16 %v1589
    %v1756 = vunpack.c.h.b16 %v1589
    %v1757 = vunpack.c.l.b16 %v1590
    %v1758 = vunpack.c.h.b16 %v1590
    %v1759 = vunpack.c.l.b16 %v1591
    %v1760 = vunpack.c.h.b16 %v1591
    %v1761 = vunpack.c.l.b16 %v1592
    %v1762 = vunpack.c.h.b16 %v1592
    %v1763 = vunpack.c.l.b16 %v1593
    %v1764 = vunpack.c.h.b16 %v1593
    %v1765 = vunpack.c.l.b16 %v1594
    %v1766 = vunpack.c.h.b16 %v1594
    %v1767 = vunpack.c.l.b16 %v1595
    %v1768 = vunpack.c.h.b16 %v1595
    %v1769 = vunpack.c.l.b16 %v1596
    %v1770 = vunpack.c.h.b16 %v1596
    %v1771 = vunpack.c.l.b16 %v1597
    %v1772 = vunpack.c.h.b16 %v1597
    %v1773 = vunpack.c.l.b16 %v1598
    %v1774 = vunpack.c.h.b16 %v1598
    %v1775 = vunpack.c.l.b16 %v1599
    %v1776 = vunpack.c.h.b16 %v1599
    %v1777 = vunpack.c.l.b16 %v1600
    %v1778 = vunpack.c.h.b16 %v1600
    %v1779 = vunpack.c.l.b16 %v1601
    %v1780 = vunpack.c.h.b16 %v1601
    %v1781 = vunpack.c.l.b16 %v1602
    %v1782 = vunpack.c.h.b16 %v1602
    %v1783 = vunpack.c.l.b16 %v1603
    %v1784 = vunpack.c.h.b16 %v1603
    %v1785 = vunpack.c.l.b16 %v1604
    %v1786 = vunpack.c.h.b16 %v1604
    %v1787 = vunpack.c.l.b16 %v1605
    %v1788 = vunpack.c.h.b16 %v1605
    %v1789 = vunpack.c.l.b16 %v1606
    %v1790 = vunpack.c.h.b16 %v1606
    %v1791 = vunpack.c.l.b16 %v1607
    %v1792 = vunpack.c.h.b16 %v1607
    %v1793 = vunpack.c.l.b16 %v1608
    %v1794 = vunpack.c.h.b16 %v1608
    %v1795 = vunpack.c.l.b16 %v1609
    %v1796 = vunpack.c.h.b16 %v1609
    %v1797 = vunpack.c.l.b16 %v1610
    %v1798 = vunpack.c.h.b16 %v1610
    %v1799 = vunpack.c.l.b16 %v1611
    %v1800 = vunpack.c.h.b16 %v1611
    %v1801 = vunpack.c.l.b16 %v1612
    %v1802 = vunpack.c.h.b16 %v1612
    %v1803 = vunpack.c.l.b16 %v1613
    %v1804 = vunpack.c.h.b16 %v1613
    %v1805 = vunpack.c.l.b16 %v1614
    %v1806 = vunpack.c.h.b16 %v1614
    %v1807 = vunpack.c.l.b16 %v1615
    %v1808 = vunpack.c.h.b16 %v1615
    %v1809 = vunpack.c.l.b16 %v1616
    %v1810 = vunpack.c.h.b16 %v1616
    %v1811 = vunpack.c.l.b16 %v1617
    %v1812 = vunpack.c.h.b16 %v1617
    %v1813 = vunpack.c.l.b16 %v1618
    %v1814 = vunpack.c.h.b16 %v1618
    %v1815 = vunpack.c.l.b16 %v1619
    %v1816 = vunpack.c.h.b16 %v1619
    %v1817 = vunpack.c.l.b16 %v1620
    %v1818 = vunpack.c.h.b16 %v1620
    %v1819 = vunpack.c.l.b16 %v1621
    %v1820 = vunpack.c.h.b16 %v1621
    %v1821 = vunpack.c.l.b16 %v1622
    %v1822 = vunpack.c.h.b16 %v1622
    %v1823 = vunpack.c.l.b16 %v1623
    %v1824 = vunpack.c.h.b16 %v1623
    %v1825 = vunpack.c.l.b16 %v1624
    %v1826 = vunpack.c.h.b16 %v1624
    %v1827 = vunpack.c.l.b16 %v1625
    %v1828 = vunpack.c.h.b16 %v1625
    %v1829 = vunpack.c.l.b16 %v1626
    %v1830 = vunpack.c.h.b16 %v1626
    %v1831 = vpack.c.b16 %v1705, %v1703
    %v1832 = vpack.c.b16 %v1706, %v1704
    %v1833 = vpack.c.b16 %v1709, %v1707
    %v1834 = vpack.c.b16 %v1710, %v1708
    %v1835 = vpack.c.b16 %v1713, %v1711
    %v1836 = vpack.c.b16 %v1714, %v1712
    %v1837 = vpack.c.b16 %v1717, %v1715
    %v1838 = vpack.c.b16 %v1718, %v1716
    %v1839 = vpack.c.b16 %v1721, %v1719
    %v1840 = vpack.c.b16 %v1722, %v1720
    %v1841 = vpack.c.b16 %v1725, %v1723
    %v1842 = vpack.c.b16 %v1726, %v1724
    %v1843 = vpack.c.b16 %v1729, %v1727
    %v1844 = vpack.c.b16 %v1730, %v1728
    %v1845 = vpack.c.b16 %v1733, %v1731
    %v1846 = vpack.c.b16 %v1734, %v1732
    %v1847 = vpack.c.b16 %v1737, %v1735
    %v1848 = vpack.c.b16 %v1738, %v1736
    %v1849 = vpack.c.b16 %v1741, %v1739
    %v1850 = vpack.c.b16 %v1742, %v1740
    %v1851 = vpack.c.b16 %v1745, %v1743
    %v1852 = vpack.c.b16 %v1746, %v1744
    %v1853 = vpack.c.b16 %v1749, %v1747
    %v1854 = vpack.c.b16 %v1750, %v1748
    %v1855 = vpack.c.b16 %v1753, %v1751
    %v1856 = vpack.c.b16 %v1754, %v1752
    %v1857 = vpack.c.b16 %v1757, %v1755
    %v1858 = vpack.c.b16 %v1758, %v1756
    %v1859 = vpack.c.b16 %v1761, %v1759
    %v1860 = vpack.c.b16 %v1762, %v1760
    %v1861 = vpack.c.b16 %v1765, %v1763
    %v1862 = vpack.c.b16 %v1766, %v1764
    %v1863 = vpack.c.b16 %v1769, %v1767
    %v1864 = vpack.c.b16 %v1770, %v1768
    %v1865 = vpack.c.b16 %v1773, %v1771
    %v1866 = vpack.c.b16 %v1774, %v1772
    %v1867 = vpack.c.b16 %v1777, %v1775
    %v1868 = vpack.c.b16 %v1778, %v1776
    %v1869 = vpack.c.b16 %v1781, %v1779
    %v1870 = vpack.c.b16 %v1782, %v1780
    %v1871 = vpack.c.b16 %v1785, %v1783
    %v1872 = vpack.c.b16 %v1786, %v1784
    %v1873 = vpack.c.b16 %v1789, %v1787
    %v1874 = vpack.c.b16 %v1790, %v1788
    %v1875 = vpack.c.b16 %v1793, %v1791
    %v1876 = vpack.c.b16 %v1794, %v1792
    %v1877 = vpack.c.b16 %v1797, %v1795
    %v1878 = vpack.c.b16 %v1798, %v1796
    %v1879 = vpack.c.b16 %v1801, %v1799
    %v1880 = vpack.c.b16 %v1802, %v1800
    %v1881 = vpack.c.b16 %v1805, %v1803
    %v1882 = vpack.c.b16 %v1806, %v1804
    %v1883 = vpack.c.b16 %v1809, %v1807
    %v1884 = vpack.c.b16 %v1810, %v1808
    %v1885 = vpack.c.b16 %v1813, %v1811
    %v1886 = vpack.c.b16 %v1814, %v1812
    %v1887 = vpack.c.b16 %v1817, %v1815
    %v1888 = vpack.c.b16 %v1818, %v1816
    %v1889 = vpack.c.b16 %v1821, %v1819
    %v1890 = vpack.c.b16 %v1822, %v1820
    %v1891 = vpack.c.b16 %v1825, %v1823
    %v1892 = vpack.c.b16 %v1826, %v1824
    %v1893 = vpack.c.b16 %v1829, %v1827
    %v1894 = vpack.c.b16 %v1830, %v1828
    %1959 = vmatprep.subr.bf16.mxu0 %v1846
    %1960 = vmatpush1.bf16.msra.mxu0 %v1845
    %1961 = vmatprep.subr.bf16.mxu0 %v1844
    %1962 = vmatpush1.bf16.msra.mxu0 %v1843
    %1963 = vmatprep.subr.bf16.mxu0 %v1842
    %1964 = vmatpush1.bf16.msra.mxu0 %v1841
    %1965 = vmatprep.subr.bf16.mxu0 %v1840
    %1966 = vmatpush1.bf16.msra.mxu0 %v1839
    %1967 = vmatprep.subr.bf16.mxu0 %v1838
    %1968 = vmatpush1.bf16.msra.mxu0 %v1837
    %1969 = vmatprep.subr.bf16.mxu0 %v1836
    %1970 = vmatpush1.bf16.msra.mxu0 %v1835
    %1971 = vmatprep.subr.bf16.mxu0 %v1834
    %1972 = vmatpush1.bf16.msra.mxu0 %v1833
    %1973 = vmatprep.subr.bf16.mxu0 %v1832
    %1974 = vmatpush1.bf16.msra.mxu0 %v1831
    %1975 = vmatprep.subr.bf16.mxu0 %v1862
    %1976 = vmatpush2.bf16.msra.mxu0 %v1861
    %1977 = vmatprep.subr.bf16.mxu0 %v1860
    %1978 = vmatpush2.bf16.msra.mxu0 %v1859
    %1979 = vmatprep.subr.bf16.mxu0 %v1858
    %1980 = vmatpush2.bf16.msra.mxu0 %v1857
    %1981 = vmatprep.subr.bf16.mxu0 %v1856
    %1982 = vmatpush2.bf16.msra.mxu0 %v1855
    %1983 = vmatprep.subr.bf16.mxu0 %v1854
    %1984 = vmatpush2.bf16.msra.mxu0 %v1853
    %1985 = vmatprep.subr.bf16.mxu0 %v1852
    %1986 = vmatpush2.bf16.msra.mxu0 %v1851
    %1987 = vmatprep.subr.bf16.mxu0 %v1850
    %1988 = vmatpush2.bf16.msra.mxu0 %v1849
    %1989 = vmatprep.subr.bf16.mxu0 %v1848
    %1990 = vmatpush2.bf16.msra.mxu0 %v1847
    %1991 = vmatprep.mubr.bf16.mxu0 %v1560
    %1992 = vmatmul.mubr.bf16.gmra.mxu0 %v1559
    %v1993 = vpop.f32.mrf.mxu0
    %v1994 = vadd.f32 %v1632, %v1993
    %v1995 = vpop.f32.mrf.mxu0
    %v1996 = vadd.f32 %v1636, %v1995
    %v1997 = vpop.f32.mrf.mxu0
    %v1998 = vpop.f32.mrf.mxu0
    %1999 = vdwg.mxu0
    %2000 = vmatprep.subr.bf16.mxu0 %v1878
    %2001 = vmatpush1.bf16.msra.mxu0 %v1877
    %2002 = vmatprep.subr.bf16.mxu0 %v1876
    %2003 = vmatpush1.bf16.msra.mxu0 %v1875
    %2004 = vmatprep.subr.bf16.mxu0 %v1874
    %2005 = vmatpush1.bf16.msra.mxu0 %v1873
    %2006 = vmatprep.subr.bf16.mxu0 %v1872
    %2007 = vmatpush1.bf16.msra.mxu0 %v1871
    %2008 = vmatprep.subr.bf16.mxu0 %v1870
    %2009 = vmatpush1.bf16.msra.mxu0 %v1869
    %2010 = vmatprep.subr.bf16.mxu0 %v1868
    %2011 = vmatpush1.bf16.msra.mxu0 %v1867
    %2012 = vmatprep.subr.bf16.mxu0 %v1866
    %2013 = vmatpush1.bf16.msra.mxu0 %v1865
    %2014 = vmatprep.subr.bf16.mxu0 %v1864
    %2015 = vmatpush1.bf16.msra.mxu0 %v1863
    %2016 = vmatprep.subr.bf16.mxu0 %v1894
    %2017 = vmatpush2.bf16.msra.mxu0 %v1893
    %2018 = vmatprep.subr.bf16.mxu0 %v1892
    %2019 = vmatpush2.bf16.msra.mxu0 %v1891
    %2020 = vmatprep.subr.bf16.mxu0 %v1890
    %2021 = vmatpush2.bf16.msra.mxu0 %v1889
    %2022 = vmatprep.subr.bf16.mxu0 %v1888
    %2023 = vmatpush2.bf16.msra.mxu0 %v1887
    %2024 = vmatprep.subr.bf16.mxu0 %v1886
    %2025 = vmatpush2.bf16.msra.mxu0 %v1885
    %2026 = vmatprep.subr.bf16.mxu0 %v1884
    %2027 = vmatpush2.bf16.msra.mxu0 %v1883
    %2028 = vmatprep.subr.bf16.mxu0 %v1882
    %2029 = vmatpush2.bf16.msra.mxu0 %v1881
    %2030 = vmatprep.subr.bf16.mxu0 %v1880
    %2031 = vmatpush2.bf16.msra.mxu0 %v1879
    %2032 = vmatprep.mubr.bf16.mxu0 %v1562
    %2033 = vmatmul.mubr.bf16.gmra.mxu0 %v1561
    %v2034 = vpop.f32.mrf.mxu0
    %v2035 = vadd.f32 %v1994, %v2034
    %v2036 = vpop.f32.mrf.mxu0
    %v2037 = vadd.f32 %v1996, %v2036
    %v2038 = vpop.f32.mrf.mxu0
    %v2039 = vpop.f32.mrf.mxu0
    %2040 = vdwg.mxu0
    %v2041 = vmul.f32 %v2035, 0.01
    %v2042 = vmul.f32 %v2037, 0.01
    %v2043 = vmax.f32 %v2035, %v2041
    %v2044 = vmax.f32 %v2037, %v2042
    %v2045 = vpack.c.bf16 %v2043, %v2043
    %v2046 = vpack.c.bf16 %v2044, %v2044
    %v2047 = vld [vmem:[#allocation9] sm:$0xff]
    %v2048 = vld [vmem:[#allocation9 + $0x8] sm:$0xff]
    %v2049 = vld [vmem:[#allocation9 + $0x10] sm:$0xff]
    %v2050 = vld [vmem:[#allocation9 + $0x18] sm:$0xff]
    %v2051 = vld [vmem:[#allocation9 + $0x20] sm:$0xff]
    %v2052 = vld [vmem:[#allocation9 + $0x28] sm:$0xff]
    %v2053 = vld [vmem:[#allocation9 + $0x30] sm:$0xff]
    %v2054 = vld [vmem:[#allocation9 + $0x38] sm:$0xff]
    %v2055 = vld [vmem:[#allocation9 + $0x40] sm:$0xff]
    %v2056 = vld [vmem:[#allocation9 + $0x48] sm:$0xff]
    %v2057 = vld [vmem:[#allocation9 + $0x50] sm:$0xff]
    %v2058 = vld [vmem:[#allocation9 + $0x58] sm:$0xff]
    %v2059 = vld [vmem:[#allocation9 + $0x60] sm:$0xff]
    %v2060 = vld [vmem:[#allocation9 + $0x68] sm:$0xff]
    %v2061 = vld [vmem:[#allocation9 + $0x70] sm:$0xff]
    %v2062 = vld [vmem:[#allocation9 + $0x78] sm:$0xff]
    %v2063 = vld [vmem:[#allocation9 + $0x80] sm:$0xff]
    %v2064 = vld [vmem:[#allocation9 + $0x88] sm:$0xff]
    %v2065 = vld [vmem:[#allocation9 + $0x90] sm:$0xff]
    %v2066 = vld [vmem:[#allocation9 + $0x98] sm:$0xff]
    %v2067 = vld [vmem:[#allocation9 + $0xa0] sm:$0xff]
    %v2068 = vld [vmem:[#allocation9 + $0xa8] sm:$0xff]
    %v2069 = vld [vmem:[#allocation9 + $0xb0] sm:$0xff]
    %v2070 = vld [vmem:[#allocation9 + $0xb8] sm:$0xff]
    %v2071 = vld [vmem:[#allocation9 + $0xc0] sm:$0xff]
    %v2072 = vld [vmem:[#allocation9 + $0xc8] sm:$0xff]
    %v2073 = vld [vmem:[#allocation9 + $0xd0] sm:$0xff]
    %v2074 = vld [vmem:[#allocation9 + $0xd8] sm:$0xff]
    %v2075 = vld [vmem:[#allocation9 + $0xe0] sm:$0xff]
    %v2076 = vld [vmem:[#allocation9 + $0xe8] sm:$0xff]
    %v2077 = vld [vmem:[#allocation9 + $0xf0] sm:$0xff]
    %v2078 = vld [vmem:[#allocation9 + $0xf8] sm:$0xff]
    %v2079 = vld [vmem:[#allocation9 + $0x100] sm:$0xff]
    %v2080 = vld [vmem:[#allocation9 + $0x108] sm:$0xff]
    %v2081 = vld [vmem:[#allocation9 + $0x110] sm:$0xff]
    %v2082 = vld [vmem:[#allocation9 + $0x118] sm:$0xff]
    %v2083 = vld [vmem:[#allocation9 + $0x120] sm:$0xff]
    %v2084 = vld [vmem:[#allocation9 + $0x128] sm:$0xff]
    %v2085 = vld [vmem:[#allocation9 + $0x130] sm:$0xff]
    %v2086 = vld [vmem:[#allocation9 + $0x138] sm:$0xff]
    %v2087 = vld [vmem:[#allocation9 + $0x140] sm:$0xff]
    %v2088 = vld [vmem:[#allocation9 + $0x148] sm:$0xff]
    %v2089 = vld [vmem:[#allocation9 + $0x150] sm:$0xff]
    %v2090 = vld [vmem:[#allocation9 + $0x158] sm:$0xff]
    %v2091 = vld [vmem:[#allocation9 + $0x160] sm:$0xff]
    %v2092 = vld [vmem:[#allocation9 + $0x168] sm:$0xff]
    %v2093 = vld [vmem:[#allocation9 + $0x170] sm:$0xff]
    %v2094 = vld [vmem:[#allocation9 + $0x178] sm:$0xff]
    %v2095 = vld [vmem:[#allocation9 + $0x180] sm:$0xff]
    %v2096 = vld [vmem:[#allocation9 + $0x188] sm:$0xff]
    %v2097 = vld [vmem:[#allocation9 + $0x190] sm:$0xff]
    %v2098 = vld [vmem:[#allocation9 + $0x198] sm:$0xff]
    %v2099 = vld [vmem:[#allocation9 + $0x1a0] sm:$0xff]
    %v2100 = vld [vmem:[#allocation9 + $0x1a8] sm:$0xff]
    %v2101 = vld [vmem:[#allocation9 + $0x1b0] sm:$0xff]
    %v2102 = vld [vmem:[#allocation9 + $0x1b8] sm:$0xff]
    %v2103 = vld [vmem:[#allocation9 + $0x1c0] sm:$0xff]
    %v2104 = vld [vmem:[#allocation9 + $0x1c8] sm:$0xff]
    %v2105 = vld [vmem:[#allocation9 + $0x1d0] sm:$0xff]
    %v2106 = vld [vmem:[#allocation9 + $0x1d8] sm:$0xff]
    %v2107 = vld [vmem:[#allocation9 + $0x1e0] sm:$0xff]
    %v2108 = vld [vmem:[#allocation9 + $0x1e8] sm:$0xff]
    %v2109 = vld [vmem:[#allocation9 + $0x1f0] sm:$0xff]
    %v2110 = vld [vmem:[#allocation9 + $0x1f8] sm:$0xff]
    %v2111 = vld [vmem:[#allocation9 + $0x200] sm:$0xff]
    %v2112 = vld [vmem:[#allocation9 + $0x208] sm:$0xff]
    %v2113 = vld [vmem:[#allocation9 + $0x210] sm:$0xff]
    %v2114 = vld [vmem:[#allocation9 + $0x218] sm:$0xff]
    %v2115 = vld [vmem:[#allocation9 + $0x220] sm:$0xff]
    %v2116 = vld [vmem:[#allocation9 + $0x228] sm:$0xff]
    %v2117 = vld [vmem:[#allocation9 + $0x230] sm:$0xff]
    %v2118 = vld [vmem:[#allocation9 + $0x238] sm:$0xff]
    %v2119 = vld [vmem:[#allocation9 + $0x240] sm:$0xff]
    %v2120 = vld [vmem:[#allocation9 + $0x248] sm:$0xff]
    %v2121 = vld [vmem:[#allocation9 + $0x250] sm:$0xff]
    %v2122 = vld [vmem:[#allocation9 + $0x258] sm:$0xff]
    %v2123 = vld [vmem:[#allocation9 + $0x260] sm:$0xff]
    %v2124 = vld [vmem:[#allocation9 + $0x268] sm:$0xff]
    %v2125 = vld [vmem:[#allocation9 + $0x270] sm:$0xff]
    %v2126 = vld [vmem:[#allocation9 + $0x278] sm:$0xff]
    %v2127 = vld [vmem:[#allocation9 + $0x280] sm:$0xff]
    %v2128 = vld [vmem:[#allocation9 + $0x288] sm:$0xff]
    %v2129 = vld [vmem:[#allocation9 + $0x290] sm:$0xff]
    %v2130 = vld [vmem:[#allocation9 + $0x298] sm:$0xff]
    %v2131 = vld [vmem:[#allocation9 + $0x2a0] sm:$0xff]
    %v2132 = vld [vmem:[#allocation9 + $0x2a8] sm:$0xff]
    %v2133 = vld [vmem:[#allocation9 + $0x2b0] sm:$0xff]
    %v2134 = vld [vmem:[#allocation9 + $0x2b8] sm:$0xff]
    %v2135 = vld [vmem:[#allocation9 + $0x2c0] sm:$0xff]
    %v2136 = vld [vmem:[#allocation9 + $0x2c8] sm:$0xff]
    %v2137 = vld [vmem:[#allocation9 + $0x2d0] sm:$0xff]
    %v2138 = vld [vmem:[#allocation9 + $0x2d8] sm:$0xff]
    %v2139 = vld [vmem:[#allocation9 + $0x2e0] sm:$0xff]
    %v2140 = vld [vmem:[#allocation9 + $0x2e8] sm:$0xff]
    %v2141 = vld [vmem:[#allocation9 + $0x2f0] sm:$0xff]
    %v2142 = vld [vmem:[#allocation9 + $0x2f8] sm:$0xff]
    %v2143 = vld [vmem:[#allocation9 + $0x300] sm:$0xff]
    %v2144 = vld [vmem:[#allocation9 + $0x308] sm:$0xff]
    %v2145 = vld [vmem:[#allocation9 + $0x310] sm:$0xff]
    %v2146 = vld [vmem:[#allocation9 + $0x318] sm:$0xff]
    %v2147 = vld [vmem:[#allocation9 + $0x320] sm:$0xff]
    %v2148 = vld [vmem:[#allocation9 + $0x328] sm:$0xff]
    %v2149 = vld [vmem:[#allocation9 + $0x330] sm:$0xff]
    %v2150 = vld [vmem:[#allocation9 + $0x338] sm:$0xff]
    %v2151 = vld [vmem:[#allocation9 + $0x340] sm:$0xff]
    %v2152 = vld [vmem:[#allocation9 + $0x348] sm:$0xff]
    %v2153 = vld [vmem:[#allocation9 + $0x350] sm:$0xff]
    %v2154 = vld [vmem:[#allocation9 + $0x358] sm:$0xff]
    %v2155 = vld [vmem:[#allocation9 + $0x360] sm:$0xff]
    %v2156 = vld [vmem:[#allocation9 + $0x368] sm:$0xff]
    %v2157 = vld [vmem:[#allocation9 + $0x370] sm:$0xff]
    %v2158 = vld [vmem:[#allocation9 + $0x378] sm:$0xff]
    %v2159 = vld [vmem:[#allocation9 + $0x380] sm:$0xff]
    %v2160 = vld [vmem:[#allocation9 + $0x388] sm:$0xff]
    %v2161 = vld [vmem:[#allocation9 + $0x390] sm:$0xff]
    %v2162 = vld [vmem:[#allocation9 + $0x398] sm:$0xff]
    %v2163 = vld [vmem:[#allocation9 + $0x3a0] sm:$0xff]
    %v2164 = vld [vmem:[#allocation9 + $0x3a8] sm:$0xff]
    %v2165 = vld [vmem:[#allocation9 + $0x3b0] sm:$0xff]
    %v2166 = vld [vmem:[#allocation9 + $0x3b8] sm:$0xff]
    %v2167 = vld [vmem:[#allocation9 + $0x3c0] sm:$0xff]
    %v2168 = vld [vmem:[#allocation9 + $0x3c8] sm:$0xff]
    %v2169 = vld [vmem:[#allocation9 + $0x3d0] sm:$0xff]
    %v2170 = vld [vmem:[#allocation9 + $0x3d8] sm:$0xff]
    %v2171 = vld [vmem:[#allocation9 + $0x3e0] sm:$0xff]
    %v2172 = vld [vmem:[#allocation9 + $0x3e8] sm:$0xff]
    %v2173 = vld [vmem:[#allocation9 + $0x3f0] sm:$0xff]
    %v2174 = vld [vmem:[#allocation9 + $0x3f8] sm:$0xff]
    %v2175 = vld [vmem:[#allocation10] sm:$0xff]
    %v2177 = vlaneseq
    %v2178 = vshrl.u32 %v2177, 7
    %v2179 = vsub.s32 0, %v2178
    %v2180 = vrot.slane %v2175, %v2179
    %v2181 = vlaneseq
    %v2182 = vshrl.u32 %v2181, 7
    %v2183 = vsub.s32 1, %v2182
    %v2184 = vrot.slane %v2175, %v2183
    %v2185 = vlaneseq
    %v2186 = vshrl.u32 %v2185, 7
    %v2187 = vsub.s32 2, %v2186
    %v2188 = vrot.slane %v2175, %v2187
    %v2189 = vlaneseq
    %v2190 = vshrl.u32 %v2189, 7
    %v2191 = vsub.s32 3, %v2190
    %v2192 = vrot.slane %v2175, %v2191
    %v2193 = vlaneseq
    %v2194 = vshrl.u32 %v2193, 7
    %v2195 = vsub.s32 4, %v2194
    %v2196 = vrot.slane %v2175, %v2195
    %v2197 = vlaneseq
    %v2198 = vshrl.u32 %v2197, 7
    %v2199 = vsub.s32 5, %v2198
    %v2200 = vrot.slane %v2175, %v2199
    %v2201 = vlaneseq
    %v2202 = vshrl.u32 %v2201, 7
    %v2203 = vsub.s32 6, %v2202
    %v2204 = vrot.slane %v2175, %v2203
    %v2205 = vlaneseq
    %v2206 = vshrl.u32 %v2205, 7
    %v2207 = vsub.s32 7, %v2206
    %v2208 = vrot.slane %v2175, %v2207
    %v2345 = vunpack.c.l.b16 %v2047
    %v2346 = vunpack.c.h.b16 %v2047
    %v2347 = vunpack.c.l.b16 %v2048
    %v2348 = vunpack.c.h.b16 %v2048
    %v2349 = vunpack.c.l.b16 %v2049
    %v2350 = vunpack.c.h.b16 %v2049
    %v2351 = vunpack.c.l.b16 %v2050
    %v2352 = vunpack.c.h.b16 %v2050
    %v2353 = vunpack.c.l.b16 %v2051
    %v2354 = vunpack.c.h.b16 %v2051
    %v2355 = vunpack.c.l.b16 %v2052
    %v2356 = vunpack.c.h.b16 %v2052
    %v2357 = vunpack.c.l.b16 %v2053
    %v2358 = vunpack.c.h.b16 %v2053
    %v2359 = vunpack.c.l.b16 %v2054
    %v2360 = vunpack.c.h.b16 %v2054
    %v2361 = vunpack.c.l.b16 %v2055
    %v2362 = vunpack.c.h.b16 %v2055
    %v2363 = vunpack.c.l.b16 %v2056
    %v2364 = vunpack.c.h.b16 %v2056
    %v2365 = vunpack.c.l.b16 %v2057
    %v2366 = vunpack.c.h.b16 %v2057
    %v2367 = vunpack.c.l.b16 %v2058
    %v2368 = vunpack.c.h.b16 %v2058
    %v2369 = vunpack.c.l.b16 %v2059
    %v2370 = vunpack.c.h.b16 %v2059
    %v2371 = vunpack.c.l.b16 %v2060
    %v2372 = vunpack.c.h.b16 %v2060
    %v2373 = vunpack.c.l.b16 %v2061
    %v2374 = vunpack.c.h.b16 %v2061
    %v2375 = vunpack.c.l.b16 %v2062
    %v2376 = vunpack.c.h.b16 %v2062
    %v2377 = vunpack.c.l.b16 %v2063
    %v2378 = vunpack.c.h.b16 %v2063
    %v2379 = vunpack.c.l.b16 %v2064
    %v2380 = vunpack.c.h.b16 %v2064
    %v2381 = vunpack.c.l.b16 %v2065
    %v2382 = vunpack.c.h.b16 %v2065
    %v2383 = vunpack.c.l.b16 %v2066
    %v2384 = vunpack.c.h.b16 %v2066
    %v2385 = vunpack.c.l.b16 %v2067
    %v2386 = vunpack.c.h.b16 %v2067
    %v2387 = vunpack.c.l.b16 %v2068
    %v2388 = vunpack.c.h.b16 %v2068
    %v2389 = vunpack.c.l.b16 %v2069
    %v2390 = vunpack.c.h.b16 %v2069
    %v2391 = vunpack.c.l.b16 %v2070
    %v2392 = vunpack.c.h.b16 %v2070
    %v2393 = vunpack.c.l.b16 %v2071
    %v2394 = vunpack.c.h.b16 %v2071
    %v2395 = vunpack.c.l.b16 %v2072
    %v2396 = vunpack.c.h.b16 %v2072
    %v2397 = vunpack.c.l.b16 %v2073
    %v2398 = vunpack.c.h.b16 %v2073
    %v2399 = vunpack.c.l.b16 %v2074
    %v2400 = vunpack.c.h.b16 %v2074
    %v2401 = vunpack.c.l.b16 %v2075
    %v2402 = vunpack.c.h.b16 %v2075
    %v2403 = vunpack.c.l.b16 %v2076
    %v2404 = vunpack.c.h.b16 %v2076
    %v2405 = vunpack.c.l.b16 %v2077
    %v2406 = vunpack.c.h.b16 %v2077
    %v2407 = vunpack.c.l.b16 %v2078
    %v2408 = vunpack.c.h.b16 %v2078
    %v2409 = vunpack.c.l.b16 %v2079
    %v2410 = vunpack.c.h.b16 %v2079
    %v2411 = vunpack.c.l.b16 %v2080
    %v2412 = vunpack.c.h.b16 %v2080
    %v2413 = vunpack.c.l.b16 %v2081
    %v2414 = vunpack.c.h.b16 %v2081
    %v2415 = vunpack.c.l.b16 %v2082
    %v2416 = vunpack.c.h.b16 %v2082
    %v2417 = vunpack.c.l.b16 %v2083
    %v2418 = vunpack.c.h.b16 %v2083
    %v2419 = vunpack.c.l.b16 %v2084
    %v2420 = vunpack.c.h.b16 %v2084
    %v2421 = vunpack.c.l.b16 %v2085
    %v2422 = vunpack.c.h.b16 %v2085
    %v2423 = vunpack.c.l.b16 %v2086
    %v2424 = vunpack.c.h.b16 %v2086
    %v2425 = vunpack.c.l.b16 %v2087
    %v2426 = vunpack.c.h.b16 %v2087
    %v2427 = vunpack.c.l.b16 %v2088
    %v2428 = vunpack.c.h.b16 %v2088
    %v2429 = vunpack.c.l.b16 %v2089
    %v2430 = vunpack.c.h.b16 %v2089
    %v2431 = vunpack.c.l.b16 %v2090
    %v2432 = vunpack.c.h.b16 %v2090
    %v2433 = vunpack.c.l.b16 %v2091
    %v2434 = vunpack.c.h.b16 %v2091
    %v2435 = vunpack.c.l.b16 %v2092
    %v2436 = vunpack.c.h.b16 %v2092
    %v2437 = vunpack.c.l.b16 %v2093
    %v2438 = vunpack.c.h.b16 %v2093
    %v2439 = vunpack.c.l.b16 %v2094
    %v2440 = vunpack.c.h.b16 %v2094
    %v2441 = vunpack.c.l.b16 %v2095
    %v2442 = vunpack.c.h.b16 %v2095
    %v2443 = vunpack.c.l.b16 %v2096
    %v2444 = vunpack.c.h.b16 %v2096
    %v2445 = vunpack.c.l.b16 %v2097
    %v2446 = vunpack.c.h.b16 %v2097
    %v2447 = vunpack.c.l.b16 %v2098
    %v2448 = vunpack.c.h.b16 %v2098
    %v2449 = vunpack.c.l.b16 %v2099
    %v2450 = vunpack.c.h.b16 %v2099
    %v2451 = vunpack.c.l.b16 %v2100
    %v2452 = vunpack.c.h.b16 %v2100
    %v2453 = vunpack.c.l.b16 %v2101
    %v2454 = vunpack.c.h.b16 %v2101
    %v2455 = vunpack.c.l.b16 %v2102
    %v2456 = vunpack.c.h.b16 %v2102
    %v2457 = vunpack.c.l.b16 %v2103
    %v2458 = vunpack.c.h.b16 %v2103
    %v2459 = vunpack.c.l.b16 %v2104
    %v2460 = vunpack.c.h.b16 %v2104
    %v2461 = vunpack.c.l.b16 %v2105
    %v2462 = vunpack.c.h.b16 %v2105
    %v2463 = vunpack.c.l.b16 %v2106
    %v2464 = vunpack.c.h.b16 %v2106
    %v2465 = vunpack.c.l.b16 %v2107
    %v2466 = vunpack.c.h.b16 %v2107
    %v2467 = vunpack.c.l.b16 %v2108
    %v2468 = vunpack.c.h.b16 %v2108
    %v2469 = vunpack.c.l.b16 %v2109
    %v2470 = vunpack.c.h.b16 %v2109
    %v2471 = vunpack.c.l.b16 %v2110
    %v2472 = vunpack.c.h.b16 %v2110
    %v2473 = vunpack.c.l.b16 %v2111
    %v2474 = vunpack.c.h.b16 %v2111
    %v2475 = vunpack.c.l.b16 %v2112
    %v2476 = vunpack.c.h.b16 %v2112
    %v2477 = vunpack.c.l.b16 %v2113
    %v2478 = vunpack.c.h.b16 %v2113
    %v2479 = vunpack.c.l.b16 %v2114
    %v2480 = vunpack.c.h.b16 %v2114
    %v2481 = vunpack.c.l.b16 %v2115
    %v2482 = vunpack.c.h.b16 %v2115
    %v2483 = vunpack.c.l.b16 %v2116
    %v2484 = vunpack.c.h.b16 %v2116
    %v2485 = vunpack.c.l.b16 %v2117
    %v2486 = vunpack.c.h.b16 %v2117
    %v2487 = vunpack.c.l.b16 %v2118
    %v2488 = vunpack.c.h.b16 %v2118
    %v2489 = vunpack.c.l.b16 %v2119
    %v2490 = vunpack.c.h.b16 %v2119
    %v2491 = vunpack.c.l.b16 %v2120
    %v2492 = vunpack.c.h.b16 %v2120
    %v2493 = vunpack.c.l.b16 %v2121
    %v2494 = vunpack.c.h.b16 %v2121
    %v2495 = vunpack.c.l.b16 %v2122
    %v2496 = vunpack.c.h.b16 %v2122
    %v2497 = vunpack.c.l.b16 %v2123
    %v2498 = vunpack.c.h.b16 %v2123
    %v2499 = vunpack.c.l.b16 %v2124
    %v2500 = vunpack.c.h.b16 %v2124
    %v2501 = vunpack.c.l.b16 %v2125
    %v2502 = vunpack.c.h.b16 %v2125
    %v2503 = vunpack.c.l.b16 %v2126
    %v2504 = vunpack.c.h.b16 %v2126
    %v2505 = vunpack.c.l.b16 %v2127
    %v2506 = vunpack.c.h.b16 %v2127
    %v2507 = vunpack.c.l.b16 %v2128
    %v2508 = vunpack.c.h.b16 %v2128
    %v2509 = vunpack.c.l.b16 %v2129
    %v2510 = vunpack.c.h.b16 %v2129
    %v2511 = vunpack.c.l.b16 %v2130
    %v2512 = vunpack.c.h.b16 %v2130
    %v2513 = vunpack.c.l.b16 %v2131
    %v2514 = vunpack.c.h.b16 %v2131
    %v2515 = vunpack.c.l.b16 %v2132
    %v2516 = vunpack.c.h.b16 %v2132
    %v2517 = vunpack.c.l.b16 %v2133
    %v2518 = vunpack.c.h.b16 %v2133
    %v2519 = vunpack.c.l.b16 %v2134
    %v2520 = vunpack.c.h.b16 %v2134
    %v2521 = vunpack.c.l.b16 %v2135
    %v2522 = vunpack.c.h.b16 %v2135
    %v2523 = vunpack.c.l.b16 %v2136
    %v2524 = vunpack.c.h.b16 %v2136
    %v2525 = vunpack.c.l.b16 %v2137
    %v2526 = vunpack.c.h.b16 %v2137
    %v2527 = vunpack.c.l.b16 %v2138
    %v2528 = vunpack.c.h.b16 %v2138
    %v2529 = vunpack.c.l.b16 %v2139
    %v2530 = vunpack.c.h.b16 %v2139
    %v2531 = vunpack.c.l.b16 %v2140
    %v2532 = vunpack.c.h.b16 %v2140
    %v2533 = vunpack.c.l.b16 %v2141
    %v2534 = vunpack.c.h.b16 %v2141
    %v2535 = vunpack.c.l.b16 %v2142
    %v2536 = vunpack.c.h.b16 %v2142
    %v2537 = vunpack.c.l.b16 %v2143
    %v2538 = vunpack.c.h.b16 %v2143
    %v2539 = vunpack.c.l.b16 %v2144
    %v2540 = vunpack.c.h.b16 %v2144
    %v2541 = vunpack.c.l.b16 %v2145
    %v2542 = vunpack.c.h.b16 %v2145
    %v2543 = vunpack.c.l.b16 %v2146
    %v2544 = vunpack.c.h.b16 %v2146
    %v2545 = vunpack.c.l.b16 %v2147
    %v2546 = vunpack.c.h.b16 %v2147
    %v2547 = vunpack.c.l.b16 %v2148
    %v2548 = vunpack.c.h.b16 %v2148
    %v2549 = vunpack.c.l.b16 %v2149
    %v2550 = vunpack.c.h.b16 %v2149
    %v2551 = vunpack.c.l.b16 %v2150
    %v2552 = vunpack.c.h.b16 %v2150
    %v2553 = vunpack.c.l.b16 %v2151
    %v2554 = vunpack.c.h.b16 %v2151
    %v2555 = vunpack.c.l.b16 %v2152
    %v2556 = vunpack.c.h.b16 %v2152
    %v2557 = vunpack.c.l.b16 %v2153
    %v2558 = vunpack.c.h.b16 %v2153
    %v2559 = vunpack.c.l.b16 %v2154
    %v2560 = vunpack.c.h.b16 %v2154
    %v2561 = vunpack.c.l.b16 %v2155
    %v2562 = vunpack.c.h.b16 %v2155
    %v2563 = vunpack.c.l.b16 %v2156
    %v2564 = vunpack.c.h.b16 %v2156
    %v2565 = vunpack.c.l.b16 %v2157
    %v2566 = vunpack.c.h.b16 %v2157
    %v2567 = vunpack.c.l.b16 %v2158
    %v2568 = vunpack.c.h.b16 %v2158
    %v2569 = vunpack.c.l.b16 %v2159
    %v2570 = vunpack.c.h.b16 %v2159
    %v2571 = vunpack.c.l.b16 %v2160
    %v2572 = vunpack.c.h.b16 %v2160
    %v2573 = vunpack.c.l.b16 %v2161
    %v2574 = vunpack.c.h.b16 %v2161
    %v2575 = vunpack.c.l.b16 %v2162
    %v2576 = vunpack.c.h.b16 %v2162
    %v2577 = vunpack.c.l.b16 %v2163
    %v2578 = vunpack.c.h.b16 %v2163
    %v2579 = vunpack.c.l.b16 %v2164
    %v2580 = vunpack.c.h.b16 %v2164
    %v2581 = vunpack.c.l.b16 %v2165
    %v2582 = vunpack.c.h.b16 %v2165
    %v2583 = vunpack.c.l.b16 %v2166
    %v2584 = vunpack.c.h.b16 %v2166
    %v2585 = vunpack.c.l.b16 %v2167
    %v2586 = vunpack.c.h.b16 %v2167
    %v2587 = vunpack.c.l.b16 %v2168
    %v2588 = vunpack.c.h.b16 %v2168
    %v2589 = vunpack.c.l.b16 %v2169
    %v2590 = vunpack.c.h.b16 %v2169
    %v2591 = vunpack.c.l.b16 %v2170
    %v2592 = vunpack.c.h.b16 %v2170
    %v2593 = vunpack.c.l.b16 %v2171
    %v2594 = vunpack.c.h.b16 %v2171
    %v2595 = vunpack.c.l.b16 %v2172
    %v2596 = vunpack.c.h.b16 %v2172
    %v2597 = vunpack.c.l.b16 %v2173
    %v2598 = vunpack.c.h.b16 %v2173
    %v2599 = vunpack.c.l.b16 %v2174
    %v2600 = vunpack.c.h.b16 %v2174
    %v2601 = vpack.c.b16 %v2353, %v2345
    %v2602 = vpack.c.b16 %v2354, %v2346
    %v2603 = vpack.c.b16 %v2355, %v2347
    %v2604 = vpack.c.b16 %v2356, %v2348
    %v2605 = vpack.c.b16 %v2357, %v2349
    %v2606 = vpack.c.b16 %v2358, %v2350
    %v2607 = vpack.c.b16 %v2359, %v2351
    %v2608 = vpack.c.b16 %v2360, %v2352
    %v2609 = vpack.c.b16 %v2369, %v2361
    %v2610 = vpack.c.b16 %v2370, %v2362
    %v2611 = vpack.c.b16 %v2371, %v2363
    %v2612 = vpack.c.b16 %v2372, %v2364
    %v2613 = vpack.c.b16 %v2373, %v2365
    %v2614 = vpack.c.b16 %v2374, %v2366
    %v2615 = vpack.c.b16 %v2375, %v2367
    %v2616 = vpack.c.b16 %v2376, %v2368
    %v2617 = vpack.c.b16 %v2385, %v2377
    %v2618 = vpack.c.b16 %v2386, %v2378
    %v2619 = vpack.c.b16 %v2387, %v2379
    %v2620 = vpack.c.b16 %v2388, %v2380
    %v2621 = vpack.c.b16 %v2389, %v2381
    %v2622 = vpack.c.b16 %v2390, %v2382
    %v2623 = vpack.c.b16 %v2391, %v2383
    %v2624 = vpack.c.b16 %v2392, %v2384
    %v2625 = vpack.c.b16 %v2401, %v2393
    %v2626 = vpack.c.b16 %v2402, %v2394
    %v2627 = vpack.c.b16 %v2403, %v2395
    %v2628 = vpack.c.b16 %v2404, %v2396
    %v2629 = vpack.c.b16 %v2405, %v2397
    %v2630 = vpack.c.b16 %v2406, %v2398
    %v2631 = vpack.c.b16 %v2407, %v2399
    %v2632 = vpack.c.b16 %v2408, %v2400
    %v2633 = vpack.c.b16 %v2417, %v2409
    %v2634 = vpack.c.b16 %v2418, %v2410
    %v2635 = vpack.c.b16 %v2419, %v2411
    %v2636 = vpack.c.b16 %v2420, %v2412
    %v2637 = vpack.c.b16 %v2421, %v2413
    %v2638 = vpack.c.b16 %v2422, %v2414
    %v2639 = vpack.c.b16 %v2423, %v2415
    %v2640 = vpack.c.b16 %v2424, %v2416
    %v2641 = vpack.c.b16 %v2433, %v2425
    %v2642 = vpack.c.b16 %v2434, %v2426
    %v2643 = vpack.c.b16 %v2435, %v2427
    %v2644 = vpack.c.b16 %v2436, %v2428
    %v2645 = vpack.c.b16 %v2437, %v2429
    %v2646 = vpack.c.b16 %v2438, %v2430
    %v2647 = vpack.c.b16 %v2439, %v2431
    %v2648 = vpack.c.b16 %v2440, %v2432
    %v2649 = vpack.c.b16 %v2449, %v2441
    %v2650 = vpack.c.b16 %v2450, %v2442
    %v2651 = vpack.c.b16 %v2451, %v2443
    %v2652 = vpack.c.b16 %v2452, %v2444
    %v2653 = vpack.c.b16 %v2453, %v2445
    %v2654 = vpack.c.b16 %v2454, %v2446
    %v2655 = vpack.c.b16 %v2455, %v2447
    %v2656 = vpack.c.b16 %v2456, %v2448
    %v2657 = vpack.c.b16 %v2465, %v2457
    %v2658 = vpack.c.b16 %v2466, %v2458
    %v2659 = vpack.c.b16 %v2467, %v2459
    %v2660 = vpack.c.b16 %v2468, %v2460
    %v2661 = vpack.c.b16 %v2469, %v2461
    %v2662 = vpack.c.b16 %v2470, %v2462
    %v2663 = vpack.c.b16 %v2471, %v2463
    %v2664 = vpack.c.b16 %v2472, %v2464
    %v2665 = vpack.c.b16 %v2481, %v2473
    %v2666 = vpack.c.b16 %v2482, %v2474
    %v2667 = vpack.c.b16 %v2483, %v2475
    %v2668 = vpack.c.b16 %v2484, %v2476
    %v2669 = vpack.c.b16 %v2485, %v2477
    %v2670 = vpack.c.b16 %v2486, %v2478
    %v2671 = vpack.c.b16 %v2487, %v2479
    %v2672 = vpack.c.b16 %v2488, %v2480
    %v2673 = vpack.c.b16 %v2497, %v2489
    %v2674 = vpack.c.b16 %v2498, %v2490
    %v2675 = vpack.c.b16 %v2499, %v2491
    %v2676 = vpack.c.b16 %v2500, %v2492
    %v2677 = vpack.c.b16 %v2501, %v2493
    %v2678 = vpack.c.b16 %v2502, %v2494
    %v2679 = vpack.c.b16 %v2503, %v2495
    %v2680 = vpack.c.b16 %v2504, %v2496
    %v2681 = vpack.c.b16 %v2513, %v2505
    %v2682 = vpack.c.b16 %v2514, %v2506
    %v2683 = vpack.c.b16 %v2515, %v2507
    %v2684 = vpack.c.b16 %v2516, %v2508
    %v2685 = vpack.c.b16 %v2517, %v2509
    %v2686 = vpack.c.b16 %v2518, %v2510
    %v2687 = vpack.c.b16 %v2519, %v2511
    %v2688 = vpack.c.b16 %v2520, %v2512
    %v2689 = vpack.c.b16 %v2529, %v2521
    %v2690 = vpack.c.b16 %v2530, %v2522
    %v2691 = vpack.c.b16 %v2531, %v2523
    %v2692 = vpack.c.b16 %v2532, %v2524
    %v2693 = vpack.c.b16 %v2533, %v2525
    %v2694 = vpack.c.b16 %v2534, %v2526
    %v2695 = vpack.c.b16 %v2535, %v2527
    %v2696 = vpack.c.b16 %v2536, %v2528
    %v2697 = vpack.c.b16 %v2545, %v2537
    %v2698 = vpack.c.b16 %v2546, %v2538
    %v2699 = vpack.c.b16 %v2547, %v2539
    %v2700 = vpack.c.b16 %v2548, %v2540
    %v2701 = vpack.c.b16 %v2549, %v2541
    %v2702 = vpack.c.b16 %v2550, %v2542
    %v2703 = vpack.c.b16 %v2551, %v2543
    %v2704 = vpack.c.b16 %v2552, %v2544
    %v2705 = vpack.c.b16 %v2561, %v2553
    %v2706 = vpack.c.b16 %v2562, %v2554
    %v2707 = vpack.c.b16 %v2563, %v2555
    %v2708 = vpack.c.b16 %v2564, %v2556
    %v2709 = vpack.c.b16 %v2565, %v2557
    %v2710 = vpack.c.b16 %v2566, %v2558
    %v2711 = vpack.c.b16 %v2567, %v2559
    %v2712 = vpack.c.b16 %v2568, %v2560
    %v2713 = vpack.c.b16 %v2577, %v2569
    %v2714 = vpack.c.b16 %v2578, %v2570
    %v2715 = vpack.c.b16 %v2579, %v2571
    %v2716 = vpack.c.b16 %v2580, %v2572
    %v2717 = vpack.c.b16 %v2581, %v2573
    %v2718 = vpack.c.b16 %v2582, %v2574
    %v2719 = vpack.c.b16 %v2583, %v2575
    %v2720 = vpack.c.b16 %v2584, %v2576
    %v2721 = vpack.c.b16 %v2593, %v2585
    %v2722 = vpack.c.b16 %v2594, %v2586
    %v2723 = vpack.c.b16 %v2595, %v2587
    %v2724 = vpack.c.b16 %v2596, %v2588
    %v2725 = vpack.c.b16 %v2597, %v2589
    %v2726 = vpack.c.b16 %v2598, %v2590
    %v2727 = vpack.c.b16 %v2599, %v2591
    %v2728 = vpack.c.b16 %v2600, %v2592
    %2857 = vmatprep.subr.bf16.mxu0 %v2658
    %2858 = vmatpush1.bf16.msra.mxu0 %v2657
    %2859 = vmatprep.subr.bf16.mxu0 %v2650
    %2860 = vmatpush1.bf16.msra.mxu0 %v2649
    %2861 = vmatprep.subr.bf16.mxu0 %v2642
    %2862 = vmatpush1.bf16.msra.mxu0 %v2641
    %2863 = vmatprep.subr.bf16.mxu0 %v2634
    %2864 = vmatpush1.bf16.msra.mxu0 %v2633
    %2865 = vmatprep.subr.bf16.mxu0 %v2626
    %2866 = vmatpush1.bf16.msra.mxu0 %v2625
    %2867 = vmatprep.subr.bf16.mxu0 %v2618
    %2868 = vmatpush1.bf16.msra.mxu0 %v2617
    %2869 = vmatprep.subr.bf16.mxu0 %v2610
    %2870 = vmatpush1.bf16.msra.mxu0 %v2609
    %2871 = vmatprep.subr.bf16.mxu0 %v2602
    %2872 = vmatpush1.bf16.msra.mxu0 %v2601
    %2873 = vmatprep.subr.bf16.mxu0 %v2722
    %2874 = vmatpush2.bf16.msra.mxu0 %v2721
    %2875 = vmatprep.subr.bf16.mxu0 %v2714
    %2876 = vmatpush2.bf16.msra.mxu0 %v2713
    %2877 = vmatprep.subr.bf16.mxu0 %v2706
    %2878 = vmatpush2.bf16.msra.mxu0 %v2705
    %2879 = vmatprep.subr.bf16.mxu0 %v2698
    %2880 = vmatpush2.bf16.msra.mxu0 %v2697
    %2881 = vmatprep.subr.bf16.mxu0 %v2690
    %2882 = vmatpush2.bf16.msra.mxu0 %v2689
    %2883 = vmatprep.subr.bf16.mxu0 %v2682
    %2884 = vmatpush2.bf16.msra.mxu0 %v2681
    %2885 = vmatprep.subr.bf16.mxu0 %v2674
    %2886 = vmatpush2.bf16.msra.mxu0 %v2673
    %2887 = vmatprep.subr.bf16.mxu0 %v2666
    %2888 = vmatpush2.bf16.msra.mxu0 %v2665
    %2889 = vmatprep.mubr.bf16.mxu0 %v2046
    %2890 = vmatmul.mubr.bf16.gmra.mxu0 %v2045
    %v2891 = vpop.f32.mrf.mxu0
    %v2892 = vadd.f32 %v2180, %v2891
    %v2893 = vpop.f32.mrf.mxu0
    %v2894 = vadd.f32 %v2184, %v2893
    %v2895 = vpop.f32.mrf.mxu0
    %v2896 = vpop.f32.mrf.mxu0
    %2897 = vdwg.mxu0
    %2898 = vmatprep.subr.bf16.mxu0 %v2660
    %2899 = vmatpush1.bf16.msra.mxu0 %v2659
    %2900 = vmatprep.subr.bf16.mxu0 %v2652
    %2901 = vmatpush1.bf16.msra.mxu0 %v2651
    %2902 = vmatprep.subr.bf16.mxu0 %v2644
    %2903 = vmatpush1.bf16.msra.mxu0 %v2643
    %2904 = vmatprep.subr.bf16.mxu0 %v2636
    %2905 = vmatpush1.bf16.msra.mxu0 %v2635
    %2906 = vmatprep.subr.bf16.mxu0 %v2628
    %2907 = vmatpush1.bf16.msra.mxu0 %v2627
    %2908 = vmatprep.subr.bf16.mxu0 %v2620
    %2909 = vmatpush1.bf16.msra.mxu0 %v2619
    %2910 = vmatprep.subr.bf16.mxu0 %v2612
    %2911 = vmatpush1.bf16.msra.mxu0 %v2611
    %2912 = vmatprep.subr.bf16.mxu0 %v2604
    %2913 = vmatpush1.bf16.msra.mxu0 %v2603
    %2914 = vmatprep.subr.bf16.mxu0 %v2724
    %2915 = vmatpush2.bf16.msra.mxu0 %v2723
    %2916 = vmatprep.subr.bf16.mxu0 %v2716
    %2917 = vmatpush2.bf16.msra.mxu0 %v2715
    %2918 = vmatprep.subr.bf16.mxu0 %v2708
    %2919 = vmatpush2.bf16.msra.mxu0 %v2707
    %2920 = vmatprep.subr.bf16.mxu0 %v2700
    %2921 = vmatpush2.bf16.msra.mxu0 %v2699
    %2922 = vmatprep.subr.bf16.mxu0 %v2692
    %2923 = vmatpush2.bf16.msra.mxu0 %v2691
    %2924 = vmatprep.subr.bf16.mxu0 %v2684
    %2925 = vmatpush2.bf16.msra.mxu0 %v2683
    %2926 = vmatprep.subr.bf16.mxu0 %v2676
    %2927 = vmatpush2.bf16.msra.mxu0 %v2675
    %2928 = vmatprep.subr.bf16.mxu0 %v2668
    %2929 = vmatpush2.bf16.msra.mxu0 %v2667
    %2930 = vmatprep.mubr.bf16.mxu0 %v2046
    %2931 = vmatmul.mubr.bf16.gmra.mxu0 %v2045
    %v2932 = vpop.f32.mrf.mxu0
    %v2933 = vadd.f32 %v2188, %v2932
    %v2934 = vpop.f32.mrf.mxu0
    %v2935 = vadd.f32 %v2192, %v2934
    %v2936 = vpop.f32.mrf.mxu0
    %v2937 = vpop.f32.mrf.mxu0
    %2938 = vdwg.mxu0
    %2939 = vmatprep.subr.bf16.mxu0 %v2662
    %2940 = vmatpush1.bf16.msra.mxu0 %v2661
    %2941 = vmatprep.subr.bf16.mxu0 %v2654
    %2942 = vmatpush1.bf16.msra.mxu0 %v2653
    %2943 = vmatprep.subr.bf16.mxu0 %v2646
    %2944 = vmatpush1.bf16.msra.mxu0 %v2645
    %2945 = vmatprep.subr.bf16.mxu0 %v2638
    %2946 = vmatpush1.bf16.msra.mxu0 %v2637
    %2947 = vmatprep.subr.bf16.mxu0 %v2630
    %2948 = vmatpush1.bf16.msra.mxu0 %v2629
    %2949 = vmatprep.subr.bf16.mxu0 %v2622
    %2950 = vmatpush1.bf16.msra.mxu0 %v2621
    %2951 = vmatprep.subr.bf16.mxu0 %v2614
    %2952 = vmatpush1.bf16.msra.mxu0 %v2613
    %2953 = vmatprep.subr.bf16.mxu0 %v2606
    %2954 = vmatpush1.bf16.msra.mxu0 %v2605
    %2955 = vmatprep.subr.bf16.mxu0 %v2726
    %2956 = vmatpush2.bf16.msra.mxu0 %v2725
    %2957 = vmatprep.subr.bf16.mxu0 %v2718
    %2958 = vmatpush2.bf16.msra.mxu0 %v2717
    %2959 = vmatprep.subr.bf16.mxu0 %v2710
    %2960 = vmatpush2.bf16.msra.mxu0 %v2709
    %2961 = vmatprep.subr.bf16.mxu0 %v2702
    %2962 = vmatpush2.bf16.msra.mxu0 %v2701
    %2963 = vmatprep.subr.bf16.mxu0 %v2694
    %2964 = vmatpush2.bf16.msra.mxu0 %v2693
    %2965 = vmatprep.subr.bf16.mxu0 %v2686
    %2966 = vmatpush2.bf16.msra.mxu0 %v2685
    %2967 = vmatprep.subr.bf16.mxu0 %v2678
    %2968 = vmatpush2.bf16.msra.mxu0 %v2677
    %2969 = vmatprep.subr.bf16.mxu0 %v2670
    %2970 = vmatpush2.bf16.msra.mxu0 %v2669
    %2971 = vmatprep.mubr.bf16.mxu0 %v2046
    %2972 = vmatmul.mubr.bf16.gmra.mxu0 %v2045
    %v2973 = vpop.f32.mrf.mxu0
    %v2974 = vadd.f32 %v2196, %v2973
    %v2975 = vpop.f32.mrf.mxu0
    %v2976 = vadd.f32 %v2200, %v2975
    %v2977 = vpop.f32.mrf.mxu0
    %v2978 = vpop.f32.mrf.mxu0
    %2979 = vdwg.mxu0
    %2980 = vmatprep.subr.bf16.mxu0 %v2664
    %2981 = vmatpush1.bf16.msra.mxu0 %v2663
    %2982 = vmatprep.subr.bf16.mxu0 %v2656
    %2983 = vmatpush1.bf16.msra.mxu0 %v2655
    %2984 = vmatprep.subr.bf16.mxu0 %v2648
    %2985 = vmatpush1.bf16.msra.mxu0 %v2647
    %2986 = vmatprep.subr.bf16.mxu0 %v2640
    %2987 = vmatpush1.bf16.msra.mxu0 %v2639
    %2988 = vmatprep.subr.bf16.mxu0 %v2632
    %2989 = vmatpush1.bf16.msra.mxu0 %v2631
    %2990 = vmatprep.subr.bf16.mxu0 %v2624
    %2991 = vmatpush1.bf16.msra.mxu0 %v2623
    %2992 = vmatprep.subr.bf16.mxu0 %v2616
    %2993 = vmatpush1.bf16.msra.mxu0 %v2615
    %2994 = vmatprep.subr.bf16.mxu0 %v2608
    %2995 = vmatpush1.bf16.msra.mxu0 %v2607
    %2996 = vmatprep.subr.bf16.mxu0 %v2728
    %2997 = vmatpush2.bf16.msra.mxu0 %v2727
    %2998 = vmatprep.subr.bf16.mxu0 %v2720
    %2999 = vmatpush2.bf16.msra.mxu0 %v2719
    %3000 = vmatprep.subr.bf16.mxu0 %v2712
    %3001 = vmatpush2.bf16.msra.mxu0 %v2711
    %3002 = vmatprep.subr.bf16.mxu0 %v2704
    %3003 = vmatpush2.bf16.msra.mxu0 %v2703
    %3004 = vmatprep.subr.bf16.mxu0 %v2696
    %3005 = vmatpush2.bf16.msra.mxu0 %v2695
    %3006 = vmatprep.subr.bf16.mxu0 %v2688
    %3007 = vmatpush2.bf16.msra.mxu0 %v2687
    %3008 = vmatprep.subr.bf16.mxu0 %v2680
    %3009 = vmatpush2.bf16.msra.mxu0 %v2679
    %3010 = vmatprep.subr.bf16.mxu0 %v2672
    %3011 = vmatpush2.bf16.msra.mxu0 %v2671
    %3012 = vmatprep.mubr.bf16.mxu0 %v2046
    %3013 = vmatmul.mubr.bf16.gmra.mxu0 %v2045
    %v3014 = vpop.f32.mrf.mxu0
    %v3015 = vadd.f32 %v2204, %v3014
    %v3016 = vpop.f32.mrf.mxu0
    %v3017 = vadd.f32 %v2208, %v3016
    %v3018 = vpop.f32.mrf.mxu0
    %v3019 = vpop.f32.mrf.mxu0
    %3020 = vdwg.mxu0
    %v3021 = vmul.f32 %v2974, 0.5
    %v3022 = vmul.f32 %v2976, 0.5
    %v3023 = vmul.f32 %v3015, 0.5
    %v3024 = vmul.f32 %v3017, 0.5
    %v3025 = vmul.f32 %v3021, 1.442695
    %v3026 = vpow.pop %v3025
    %v3027 = vmul.f32 %v3022, 1.442695
    %v3028 = vpow.pop %v3027
    %v3029 = vmul.f32 %v3023, 1.442695
    %v3030 = vpow.pop %v3029
    %v3031 = vmul.f32 %v3024, 1.442695
    %v3032 = vpow.pop %v3031
    %v3033 = vld [vmem:[#allocation12] sm:$0xff]
    %v3034 = vld [vmem:[#allocation12 + $0x8] sm:$0xff]
    %v3035 = vld [vmem:[#allocation12 + $0x10] sm:$0xff]
    %v3036 = vld [vmem:[#allocation12 + $0x18] sm:$0xff]
    %v3037 = vmul.f32 %v3033, %v3026
    %v3038 = vmul.f32 %v3034, %v3028
    %v3039 = vmul.f32 %v3035, %v3030
    %v3040 = vmul.f32 %v3036, %v3032
    %v3041 = vadd.f32 %v3037, %v2892
    %v3042 = vadd.f32 %v3038, %v2894
    %v3043 = vadd.f32 %v3039, %v2933
    %v3044 = vadd.f32 %v3040, %v2935
    %3045 = vst [vmem:[%s8] sm:$0xff] %v3041
    %3046 = vst [vmem:[%s8 + $0x8] sm:$0xff] %v3042
    %3047 = vst [vmem:[%s8 + $0x10] sm:$0xff] %v3043
    %3048 = vst [vmem:[%s8 + $0x18] sm:$0xff] %v3044
    %3049 = vst [vmem:[%s9] sm:$0xff] %v2892
    %3050 = vst [vmem:[%s9 + $0x8] sm:$0xff] %v2894
    %3051 = vst [vmem:[%s9 + $0x10] sm:$0xff] %v2933
    %3052 = vst [vmem:[%s9 + $0x18] sm:$0xff] %v2935
    %3053 = vst [vmem:[%s10] sm:$0xff] %v2974
    %3054 = vst [vmem:[%s10 + $0x8] sm:$0xff] %v2976
    %3055 = vst [vmem:[%s10 + $0x10] sm:$0xff] %v3015
    %3056 = vst [vmem:[%s10 + $0x18] sm:$0xff] %v3017
    // Predicated region
    $region62: #{text_encoder_forward.1} parent=1 // pred_check
      _
    $region63: #{text_encoder_forward.1} parent=1 // pred_check_branch
      %3058 = sbr.rel (0) target = $region65
    $region64: #{text_encoder_forward.1} parent=1 // pred_region
      _
    $region65: #{text_encoder_forward.1} parent=1 // pred_fallthru
      _
    // Predicated region
    $region66: #{text_encoder_forward.1} parent=1 // pred_check
      _
    $region67: #{text_encoder_forward.1} parent=1 // pred_check_branch
      %3060 = sbr.rel (0) target = $region69
    $region68: #{text_encoder_forward.1} parent=1 // pred_region
      _
    $region69: #{text_encoder_forward.1} parent=1 // pred_fallthru
      _
    // Predicated region
    $region70: #{text_encoder_forward.1} parent=1 // pred_check
      _
    $region71: #{text_encoder_forward.1} parent=1 // pred_check_branch
      %3062 = sbr.rel (0) target = $region73
    $region72: #{text_encoder_forward.1} parent=1 // pred_region
      _
    $region73: #{text_encoder_forward.1} parent=1 // pred_fallthru
      _
    // Predicated region
    $region74: #{text_encoder_forward.1} parent=1 // pred_check
      _
    $region75: #{text_encoder_forward.1} parent=1 // pred_check_branch
      %3064 = sbr.rel (0) target = $region77
    $region76: #{text_encoder_forward.1} parent=1 // pred_region
      _
    $region77: #{text_encoder_forward.1} parent=1 // pred_fallthru
      _
    // Predicated region
    $region78: #{text_encoder_forward.1} parent=1 // pred_check
      _
    $region79: #{text_encoder_forward.1} parent=1 // pred_check_branch
      %3066 = sbr.rel (0) target = $region81
    $region80: #{text_encoder_forward.1} parent=1 // pred_region
      _
    $region81: #{text_encoder_forward.1} parent=1 // pred_fallthru
      _
    // Predicated region
    $region82: #{text_encoder_forward.1} parent=1 // pred_check
      _
    $region83: #{text_encoder_forward.1} parent=1 // pred_check_branch
      %3068 = sbr.rel (0) target = $region85
    $region84: #{text_encoder_forward.1} parent=1 // pred_region
      _
    $region85: #{text_encoder_forward.1} parent=1 // pred_fallthru
      _
    %3069 = vsyncpa [#allocation3], 1
    %3070 = vsyncpa [#allocation5], 1
    %3071 = vsyncpa [#allocation8], 1
    %3072 = vsyncpa [#allocation11], 1

</llo_original>
